<compile_context>
chip_gen: v7x
topology: tpu7x:2x2x1
jax: 0.10.0
libtpu: 0.0.40
codegen_flags: <defaults>
</compile_context>

<pallas_src>
import functools

import jax
import jax.numpy as jnp
from jax.experimental import pallas as pl
from jax.experimental.pallas import tpu as pltpu

BN_EPS = 1e-3   # EfficientNet batch-norm eps
LANE = 128      # TPU lane width; all channel dims are padded to this


# ---------------------------------------------------------------------------
# Fused kernel: one grid step == `B` batch elements, everything stays in VMEM.
# ---------------------------------------------------------------------------
def _dr_fused_kernel(pt_ref, stem_w_ref, stem_b_ref, exp_w_ref, exp_b_ref,
                     dw_w_ref, dw_b_ref, se_w1_ref, se_b1_ref, se_w2_ref,
                     se_b2_ref, proj_w_ref, proj_b_ref, head_w_ref, head_b_ref,
                     fc_w_ref, fc_b_ref, o_ref, dwpad_ref, *, B, Ho, Wo):
    C = exp_w_ref.shape[1]          # lane-padded channel width (128)
    K = pt_ref.shape[2]             # lane-padded im2col width (27 real)
    M = Ho * Wo

    def swish(v):
        return v * jax.nn.sigmoid(v)

    def mm(a, w_ref, b_ref):        # bf16 MXU operands, f32 accumulation
        return jnp.dot(a.astype(jnp.bfloat16), w_ref[...],
                       preferred_element_type=jnp.float32) + b_ref[...]

    # ---- stem: 3x3 stride-2 conv (im2col done once in the wrapper) as ONE
    #      MXU matmul, + folded BN shift + swish.
    patches = pt_ref[...].reshape(B * M, K)                   # [B*M, 128]
    y = swish(mm(patches, stem_w_ref, stem_b_ref))            # [B*M, C]

    # ---- MBConv expand 1x1 + BN + swish --------------------------------
    h = swish(mm(y, exp_w_ref, exp_b_ref))                    # [B*M, C]

    # ---- depthwise 3x3 (pad=1) + BN + swish; halo kept in VMEM scratch.
    #      Only the thin halo strips are zeroed (interior fully overwritten);
    #      done every step so core-parallel grid sharding stays correct.
    zrow = jnp.zeros((B, 1, Wo + 2, C), jnp.float32)
    zcol = jnp.zeros((B, Ho, 1, C), jnp.float32)
    dwpad_ref[:, 0:1, :, :] = zrow
    dwpad_ref[:, Ho + 1:Ho + 2, :, :] = zrow
    dwpad_ref[:, 1:Ho + 1, 0:1, :] = zcol
    dwpad_ref[:, 1:Ho + 1, Wo + 1:Wo + 2, :] = zcol
    dwpad_ref[:, 1:Ho + 1, 1:Wo + 1, :] = h.reshape(B, Ho, Wo, C)

    dw_w = dw_w_ref[...]                                      # [9, C] f32
    dacc = jnp.zeros((B, Ho, Wo, C), jnp.float32)
    for dy in range(3):
        for dx in range(3):
            dacc += (dwpad_ref[:, dy:dy + Ho, dx:dx + Wo, :]
                     * dw_w[3 * dy + dx])
    d2 = swish(dacc + dw_b_ref[...]).reshape(B, M, C)         # [B, M, C]

    # ---- squeeze & excite (per image: mean -> FC -> swish -> FC -> gate) -
    s = jnp.mean(d2, axis=1)                                  # [B, C]
    g = swish(mm(s, se_w1_ref, se_b1_ref))
    g = jax.nn.sigmoid(mm(g, se_w2_ref, se_b2_ref))           # [B, C]
    d2 = (d2 * g[:, None, :]).reshape(B * M, C)

    # ---- project 1x1 + BN (no activation) -------------------------------
    p = mm(d2, proj_w_ref, proj_b_ref)

    # ---- head 1x1 + BN + swish, fused with global-avg-pool + final FC ---
    hd = swish(mm(p, head_w_ref, head_b_ref)).reshape(B, M, C)
    pooled = jnp.mean(hd, axis=1)                             # [B, C]
    o_ref[...] = mm(pooled, fc_w_ref, fc_b_ref).reshape(B, 1, C)  # lane 0 real


# ---------------------------------------------------------------------------
# Parameter init (pretrained=False -> random init) and one-time prep
# (pad channels to lane width, fold BN scale into weights, cast to bf16).
# ---------------------------------------------------------------------------
def init_params(key, cin=3, c_stem=16, c_exp=64, c_se=16, c_proj=24,
                c_head=32, num_classes=1):
    ks = jax.random.split(key, 8)

    def dense(k, kin, kout):
        return jax.random.normal(k, (kin, kout), jnp.float32) * (2.0 / kin) ** 0.5

    def bn(c):
        return dict(g=jnp.ones((c,)), b=jnp.zeros((c,)),
                    m=jnp.zeros((c,)), v=jnp.ones((c,)))

    return {
        "stem_w": jax.random.normal(ks[0], (9, cin, c_stem), jnp.float32)
                  * (2.0 / (9 * cin)) ** 0.5,
        "stem_bn": bn(c_stem),
        "exp_w": dense(ks[1], c_stem, c_exp), "exp_bn": bn(c_exp),
        "dw_w": jax.random.normal(ks[2], (3, 3, c_exp), jnp.float32)
                * (2.0 / 9.0) ** 0.5,
        "dw_bn": bn(c_exp),
        "se_w1": dense(ks[3], c_exp, c_se), "se_b1": jnp.zeros((c_se,)),
        "se_w2": dense(ks[4], c_se, c_exp), "se_b2": jnp.zeros((c_exp,)),
        "proj_w": dense(ks[5], c_exp, c_proj), "proj_bn": bn(c_proj),
        "head_w": dense(ks[6], c_proj, c_head), "head_bn": bn(c_head),
        "fc_w": jax.random.normal(ks[7], (c_head, num_classes), jnp.float32)
                * (1.0 / c_head) ** 0.5,
        "fc_b": jnp.zeros((num_classes,)),
    }


def prepare_params(p, lane=LANE):
    C = lane

    def bn_fold(bn):   # works for real running stats too, not just init values
        scale = bn["g"] / jnp.sqrt(bn["v"] + BN_EPS)
        return scale, bn["b"] - bn["m"] * scale

    def padc(a):       # zero-pad the last (channel) axis to the lane width
        pad = [(0, 0)] * a.ndim
        pad[-1] = (0, C - a.shape[-1])
        return jnp.pad(a, pad)

    def pad2(a):       # zero-pad a 2-D weight to (C, C)
        return jnp.pad(a, ((0, C - a.shape[0]), (0, C - a.shape[1])))

    def row(v):
        return padc(v).reshape(1, C).astype(jnp.float32)

    stem_s, stem_sh = bn_fold(p["stem_bn"])
    exp_s, exp_sh = bn_fold(p["exp_bn"])
    dw_s, dw_sh = bn_fold(p["dw_bn"])
    proj_s, proj_sh = bn_fold(p["proj_bn"])
    head_s, head_sh = bn_fold(p["head_bn"])

    taps, cin, c_stem = p["stem_w"].shape
    stem_mat = (p["stem_w"] * stem_s).reshape(taps * cin, c_stem)  # [27, c_stem]

    return {
        # BN scale folded into weights; only the shift add remains in-kernel.
        "stem_w": pad2(stem_mat).astype(jnp.bfloat16),     # [128,128] MXU weight
        "stem_b": row(stem_sh),
        "exp_w": pad2(p["exp_w"] * exp_s).astype(jnp.bfloat16),
        "exp_b": row(exp_sh),
        "dw_w": padc((p["dw_w"] * dw_s).reshape(9, -1)).astype(jnp.float32),
        "dw_b": row(dw_sh),
        "se_w1": pad2(p["se_w1"]).astype(jnp.bfloat16), "se_b1": row(p["se_b1"]),
        "se_w2": pad2(p["se_w2"]).astype(jnp.bfloat16), "se_b2": row(p["se_b2"]),
        "proj_w": pad2(p["proj_w"] * proj_s).astype(jnp.bfloat16),
        "proj_b": row(proj_sh),
        "head_w": pad2(p["head_w"] * head_s).astype(jnp.bfloat16),
        "head_b": row(head_sh),
        "fc_w": pad2(p["fc_w"]).astype(jnp.bfloat16),
        "fc_b": row(p["fc_b"]),
    }


_WEIGHT_ORDER = ("stem_w", "stem_b", "exp_w", "exp_b", "dw_w", "dw_b",
                 "se_w1", "se_b1", "se_w2", "se_b2", "proj_w", "proj_b",
                 "head_w", "head_b", "fc_w", "fc_b")


def _pick_batch_block(n, max_block=8):
    # Largest divisor of n that is <= max_block while keeping >= 2 grid steps
    # (so v7x's two TensorCores both get work).
    best = 1
    for b in range(1, min(n, max_block) + 1):
        if n % b == 0 and (n // b >= 2 or n == 1):
            best = b
    return best


# ---------------------------------------------------------------------------
# Forward (matches DRModel.forward: efficientnet branch -> NO softmax).
# ---------------------------------------------------------------------------
def dr_model_forward(x_nchw, prep, batch_block=None):
    x = jnp.transpose(x_nchw, (0, 2, 3, 1)).astype(jnp.float32)  # NCHW -> NHWC
    N, H, W, Cin = x.shape
    if H % 2 or W % 2:
        raise ValueError("even spatial dims required (stride-2 stem)")
    Ho, Wo = H // 2, W // 2
    M = Ho * Wo
    C = prep["exp_w"].shape[1]     # 128
    K = prep["stem_w"].shape[0]    # 128 (27 real)

    if batch_block is None:
        batch_block = _pick_batch_block(N)
    if N % batch_block:
        raise ValueError("batch must be divisible by batch_block")

    # Single boundary repack: im2col of the 3x3 stride-2 stem (27 f32/pixel),
    # padded to the 128-lane width -> dense DMA and an MXU-ready stem operand.
    xp = jnp.pad(x, ((0, 0), (1, 1), (1, 1), (0, 0)))
    taps = [xp[:, dy:dy + 2 * Ho:2, dx:dx + 2 * Wo:2, :]
            for dy in range(3) for dx in range(3)]
    pt = jnp.concatenate(taps, axis=-1).reshape(N, M, 9 * Cin)   # [N, M, 27]
    pt = jnp.pad(pt, ((0, 0), (0, 0), (0, K - 9 * Cin)))          # [N, M, 128]

    w_args = [prep[k] for k in _WEIGHT_ORDER]

    def const_spec(shape):         # resident weights: constant block index
        nd = len(shape)
        return pl.BlockSpec(shape, lambda n, _nd=nd: (0,) * _nd)

    in_specs = [pl.BlockSpec((batch_block, M, K), lambda n: (n, 0, 0))]
    in_specs += [const_spec(a.shape) for a in w_args]

    out = pl.pallas_call(
        functools.partial(_dr_fused_kernel, B=batch_block, Ho=Ho, Wo=Wo),
        out_shape=jax.ShapeDtypeStruct((N, 1, C), jnp.float32),  # lane-dense
        grid=(N // batch_block,),
        in_specs=in_specs,
        out_specs=pl.BlockSpec((batch_block, 1, C), lambda n: (n, 0, 0)),
        scratch_shapes=[pltpu.VMEM((batch_block, Ho + 2, Wo + 2, C),
                                   jnp.float32)],
        compiler_params=pltpu.CompilerParams(
            dimension_semantics=("parallel",),       # batch blocks across TCs
            vmem_limit_bytes=32 * 1024 * 1024),
    )(pt, *w_args)

    # final _fc has num_classes=1; 'efficient' in model_name -> no softmax.
    return out[:, 0, :1]


# ---------------------------------------------------------------------------
# Pure-JAX reference (same padded/folded params, same bf16 operand rounding).
# ---------------------------------------------------------------------------
def _forward_reference(x_nchw, prep):
    x = jnp.transpose(x_nchw, (0, 2, 3, 1)).astype(jnp.float32)
    N, H, W, Cin = x.shape
    Ho, Wo = H // 2, W // 2
    M = Ho * Wo
    C = prep["exp_w"].shape[1]
    K = prep["stem_w"].shape[0]

    def swish(v):
        return v * jax.nn.sigmoid(v)

    def mm(a, w, b):
        return jnp.dot(a.astype(jnp.bfloat16), w,
                       preferred_element_type=jnp.float32) + b

    xp = jnp.pad(x, ((0, 0), (1, 1), (1, 1), (0, 0)))
    taps = [xp[:, dy:dy + 2 * Ho:2, dx:dx + 2 * Wo:2, :]
            for dy in range(3) for dx in range(3)]
    pt = jnp.concatenate(taps, axis=-1).reshape(N, M, 9 * Cin)
    pt = jnp.pad(pt, ((0, 0), (0, 0), (0, K - 9 * Cin))).reshape(N * M, K)

    y = swish(mm(pt, prep["stem_w"], prep["stem_b"]))
    h = swish(mm(y, prep["exp_w"], prep["exp_b"])).reshape(N, Ho, Wo, C)
    hp = jnp.pad(h, ((0, 0), (1, 1), (1, 1), (0, 0)))
    dacc = jnp.zeros_like(h)
    for dy in range(3):
        for dx in range(3):
            dacc += hp[:, dy:dy + Ho, dx:dx + Wo, :] * prep["dw_w"][3 * dy + dx]
    d = swish(dacc + prep["dw_b"].reshape(1, 1, 1, C))
    s = jnp.mean(d, axis=(1, 2))
    g = swish(mm(s, prep["se_w1"], prep["se_b1"]))
    g = jax.nn.sigmoid(mm(g, prep["se_w2"], prep["se_b2"]))
    d = d * g[:, None, None, :]
    p = mm(d.reshape(N * M, C), prep["proj_w"], prep["proj_b"])
    hd = swish(mm(p, prep["head_w"], prep["head_b"])).reshape(N, M, C)
    pooled = jnp.mean(hd, axis=1)
    return mm(pooled, prep["fc_w"], prep["fc_b"])[:, :1]


if __name__ == "__main__":
    key = jax.random.PRNGKey(0)
    k_x, k_p = jax.random.split(key)
    x = jax.random.normal(k_x, (2, 3, 16, 16), jnp.float32)   # NCHW like PyTorch
    params = init_params(k_p)
    prep = prepare_params(params)

    fwd = jax.jit(dr_model_forward)
    out = jax.block_until_ready(fwd(x, prep))
    assert out.shape == (2, 1), out.shape
    assert bool(jnp.all(jnp.isfinite(out)))

    ref = jax.block_until_ready(_forward_reference(x, prep))
    max_err = float(jnp.max(jnp.abs(out - ref)))
    assert max_err < 1e-2, f"mismatch vs reference: {max_err}"

    print("KERNEL_OK")
</pallas_src>

<mosaic_0001>
module attributes {stable_mosaic.version = 11 : i64} {
  func.func @_dr_fused_kernel(%arg0: i32, %arg1: memref<1x64x128xf32, #tpu.memory_space<vmem>>, %arg2: memref<128x128xbf16, #tpu.memory_space<vmem>>, %arg3: memref<1x128xf32, #tpu.memory_space<vmem>>, %arg4: memref<128x128xbf16, #tpu.memory_space<vmem>>, %arg5: memref<1x128xf32, #tpu.memory_space<vmem>>, %arg6: memref<9x128xf32, #tpu.memory_space<vmem>>, %arg7: memref<1x128xf32, #tpu.memory_space<vmem>>, %arg8: memref<128x128xbf16, #tpu.memory_space<vmem>>, %arg9: memref<1x128xf32, #tpu.memory_space<vmem>>, %arg10: memref<128x128xbf16, #tpu.memory_space<vmem>>, %arg11: memref<1x128xf32, #tpu.memory_space<vmem>>, %arg12: memref<128x128xbf16, #tpu.memory_space<vmem>>, %arg13: memref<1x128xf32, #tpu.memory_space<vmem>>, %arg14: memref<128x128xbf16, #tpu.memory_space<vmem>>, %arg15: memref<1x128xf32, #tpu.memory_space<vmem>>, %arg16: memref<128x128xbf16, #tpu.memory_space<vmem>>, %arg17: memref<1x128xf32, #tpu.memory_space<vmem>>, %arg18: memref<1x1x128xf32, #tpu.memory_space<vmem>>, %arg19: memref<1x10x10x128xf32, #tpu.memory_space<vmem>>) attributes {dimension_semantics = [#tpu.dimension_semantics<parallel>], iteration_bounds = array<i64: 2>, scalar_prefetch = 0 : i64, scratch_operands = 1 : i64, tpu.core_type = #tpu.core_type<tc>, window_params = [{transform_indices = @transform_0, window_bounds = array<i64: 1, 64, 128>}, {pipeline_mode = #tpu.pipeline_mode<synchronous>, transform_indices = @transform_1, window_bounds = array<i64: 128, 128>}, {pipeline_mode = #tpu.pipeline_mode<synchronous>, transform_indices = @transform_2, window_bounds = array<i64: 1, 128>}, {pipeline_mode = #tpu.pipeline_mode<synchronous>, transform_indices = @transform_3, window_bounds = array<i64: 128, 128>}, {pipeline_mode = #tpu.pipeline_mode<synchronous>, transform_indices = @transform_4, window_bounds = array<i64: 1, 128>}, {pipeline_mode = #tpu.pipeline_mode<synchronous>, transform_indices = @transform_5, window_bounds = array<i64: 9, 128>}, {pipeline_mode = #tpu.pipeline_mode<synchronous>, transform_indices = @transform_6, window_bounds = array<i64: 1, 128>}, {pipeline_mode = #tpu.pipeline_mode<synchronous>, transform_indices = @transform_7, window_bounds = array<i64: 128, 128>}, {pipeline_mode = #tpu.pipeline_mode<synchronous>, transform_indices = @transform_8, window_bounds = array<i64: 1, 128>}, {pipeline_mode = #tpu.pipeline_mode<synchronous>, transform_indices = @transform_9, window_bounds = array<i64: 128, 128>}, {pipeline_mode = #tpu.pipeline_mode<synchronous>, transform_indices = @transform_10, window_bounds = array<i64: 1, 128>}, {pipeline_mode = #tpu.pipeline_mode<synchronous>, transform_indices = @transform_11, window_bounds = array<i64: 128, 128>}, {pipeline_mode = #tpu.pipeline_mode<synchronous>, transform_indices = @transform_12, window_bounds = array<i64: 1, 128>}, {pipeline_mode = #tpu.pipeline_mode<synchronous>, transform_indices = @transform_13, window_bounds = array<i64: 128, 128>}, {pipeline_mode = #tpu.pipeline_mode<synchronous>, transform_indices = @transform_14, window_bounds = array<i64: 1, 128>}, {pipeline_mode = #tpu.pipeline_mode<synchronous>, transform_indices = @transform_15, window_bounds = array<i64: 128, 128>}, {pipeline_mode = #tpu.pipeline_mode<synchronous>, transform_indices = @transform_16, window_bounds = array<i64: 1, 128>}, {transform_indices = @transform_17, window_bounds = array<i64: 1, 1, 128>}]} {
    %c0 = arith.constant 0 : index
    %c0_0 = arith.constant 0 : index
    %c0_1 = arith.constant 0 : index
    %0 = vector.load %arg1[%c0, %c0_0, %c0_1] : memref<1x64x128xf32, #tpu.memory_space<vmem>>, vector<1x64x128xf32>
    %1 = vector.shape_cast %0 : vector<1x64x128xf32> to vector<64x128xf32>
    %2 = arith.truncf %1 : vector<64x128xf32> to vector<64x128xbf16>
    %c0_2 = arith.constant 0 : index
    %c0_3 = arith.constant 0 : index
    %3 = vector.load %arg2[%c0_2, %c0_3] : memref<128x128xbf16, #tpu.memory_space<vmem>>, vector<128x128xbf16>
    %cst = arith.constant dense<0.000000e+00> : vector<64x128xf32>
    %4 = tpu.matmul %2, %3, %cst {dimension_numbers = #tpu.dot_dimension_numbers<[1], [0], [0], [1], [0, 0, 1, 1], [], []>} : vector<64x128xbf16>, vector<128x128xbf16>, vector<64x128xf32> -> vector<64x128xf32>
    %c0_4 = arith.constant 0 : index
    %c0_5 = arith.constant 0 : index
    %5 = vector.load %arg3[%c0_4, %c0_5] : memref<1x128xf32, #tpu.memory_space<vmem>>, vector<1x128xf32>
    %6 = vector.broadcast %5 : vector<1x128xf32> to vector<64x128xf32>
    %7 = arith.addf %4, %6 : vector<64x128xf32>
    %8 = arith.negf %7 : vector<64x128xf32>
    %9 = math.exp %8 : vector<64x128xf32>
    %cst_6 = arith.constant 1.000000e+00 : f32
    %10 = vector.broadcast %cst_6 : f32 to vector<64x128xf32>
    %11 = arith.addf %10, %9 : vector<64x128xf32>
    %12 = arith.divf %10, %11 : vector<64x128xf32>
    %13 = arith.mulf %7, %12 : vector<64x128xf32>
    %14 = arith.truncf %13 : vector<64x128xf32> to vector<64x128xbf16>
    %c0_7 = arith.constant 0 : index
    %c0_8 = arith.constant 0 : index
    %15 = vector.load %arg4[%c0_7, %c0_8] : memref<128x128xbf16, #tpu.memory_space<vmem>>, vector<128x128xbf16>
    %cst_9 = arith.constant dense<0.000000e+00> : vector<64x128xf32>
    %16 = tpu.matmul %14, %15, %cst_9 {dimension_numbers = #tpu.dot_dimension_numbers<[1], [0], [0], [1], [0, 0, 1, 1], [], []>} : vector<64x128xbf16>, vector<128x128xbf16>, vector<64x128xf32> -> vector<64x128xf32>
    %c0_10 = arith.constant 0 : index
    %c0_11 = arith.constant 0 : index
    %17 = vector.load %arg5[%c0_10, %c0_11] : memref<1x128xf32, #tpu.memory_space<vmem>>, vector<1x128xf32>
    %18 = vector.broadcast %17 : vector<1x128xf32> to vector<64x128xf32>
    %19 = arith.addf %16, %18 : vector<64x128xf32>
    %20 = arith.negf %19 : vector<64x128xf32>
    %21 = math.exp %20 : vector<64x128xf32>
    %cst_12 = arith.constant 1.000000e+00 : f32
    %22 = vector.broadcast %cst_12 : f32 to vector<64x128xf32>
    %23 = arith.addf %22, %21 : vector<64x128xf32>
    %24 = arith.divf %22, %23 : vector<64x128xf32>
    %25 = arith.mulf %19, %24 : vector<64x128xf32>
    %cst_13 = arith.constant 0.000000e+00 : f32
    %26 = vector.broadcast %cst_13 : f32 to vector<1x1x10x128xf32>
    %cst_14 = arith.constant 0.000000e+00 : f32
    %27 = vector.broadcast %cst_14 : f32 to vector<1x8x1x128xf32>
    %c0_15 = arith.constant 0 : index
    %c0_16 = arith.constant 0 : index
    %c0_17 = arith.constant 0 : index
    %c0_18 = arith.constant 0 : index
    %28 = vector.load %arg19[%c0_15, %c0_16, %c0_17, %c0_18] : memref<1x10x10x128xf32, #tpu.memory_space<vmem>>, vector<1x1x10x128xf32>
    tpu.vector_store %arg19[%c0_15, %c0_16, %c0_17, %c0_18], %26 {strides = array<i32>} : memref<1x10x10x128xf32, #tpu.memory_space<vmem>>, vector<1x1x10x128xf32>,
    %c0_19 = arith.constant 0 : index
    %c9 = arith.constant 9 : index
    %c0_20 = arith.constant 0 : index
    %c0_21 = arith.constant 0 : index
    %29 = vector.load %arg19[%c0_19, %c9, %c0_20, %c0_21] : memref<1x10x10x128xf32, #tpu.memory_space<vmem>>, vector<1x1x10x128xf32>
    tpu.vector_store %arg19[%c0_19, %c9, %c0_20, %c0_21], %26 {strides = array<i32>} : memref<1x10x10x128xf32, #tpu.memory_space<vmem>>, vector<1x1x10x128xf32>,
    %c0_22 = arith.constant 0 : index
    %c1 = arith.constant 1 : index
    %c0_23 = arith.constant 0 : index
    %c0_24 = arith.constant 0 : index
    %30 = vector.load %arg19[%c0_22, %c1, %c0_23, %c0_24] : memref<1x10x10x128xf32, #tpu.memory_space<vmem>>, vector<1x8x1x128xf32>
    tpu.vector_store %arg19[%c0_22, %c1, %c0_23, %c0_24], %27 {strides = array<i32>} : memref<1x10x10x128xf32, #tpu.memory_space<vmem>>, vector<1x8x1x128xf32>,
    %c0_25 = arith.constant 0 : index
    %c1_26 = arith.constant 1 : index
    %c9_27 = arith.constant 9 : index
    %c0_28 = arith.constant 0 : index
    %31 = vector.load %arg19[%c0_25, %c1_26, %c9_27, %c0_28] : memref<1x10x10x128xf32, #tpu.memory_space<vmem>>, vector<1x8x1x128xf32>
    tpu.vector_store %arg19[%c0_25, %c1_26, %c9_27, %c0_28], %27 {strides = array<i32>} : memref<1x10x10x128xf32, #tpu.memory_space<vmem>>, vector<1x8x1x128xf32>,
    %32 = vector.shape_cast %25 : vector<64x128xf32> to vector<1x8x8x128xf32>
    %c0_29 = arith.constant 0 : index
    %c1_30 = arith.constant 1 : index
    %c1_31 = arith.constant 1 : index
    %c0_32 = arith.constant 0 : index
    %33 = vector.load %arg19[%c0_29, %c1_30, %c1_31, %c0_32] : memref<1x10x10x128xf32, #tpu.memory_space<vmem>>, vector<1x8x8x128xf32>
    tpu.vector_store %arg19[%c0_29, %c1_30, %c1_31, %c0_32], %32 {strides = array<i32>} : memref<1x10x10x128xf32, #tpu.memory_space<vmem>>, vector<1x8x8x128xf32>,
    %c0_33 = arith.constant 0 : index
    %c0_34 = arith.constant 0 : index
    %34 = vector.load %arg6[%c0_33, %c0_34] : memref<9x128xf32, #tpu.memory_space<vmem>>, vector<9x128xf32>
    %cst_35 = arith.constant 0.000000e+00 : f32
    %35 = vector.broadcast %cst_35 : f32 to vector<1x8x8x128xf32>
    %c0_36 = arith.constant 0 : index
    %c0_37 = arith.constant 0 : index
    %c0_38 = arith.constant 0 : index
    %c0_39 = arith.constant 0 : index
    %36 = vector.load %arg19[%c0_36, %c0_37, %c0_38, %c0_39] : memref<1x10x10x128xf32, #tpu.memory_space<vmem>>, vector<1x8x8x128xf32>
    %37 = vector.extract_strided_slice %34 {offsets = [0, 0], sizes = [1, 128], strides = [1, 1]} : vector<9x128xf32> to vector<1x128xf32>
    %38 = vector.shape_cast %37 : vector<1x128xf32> to vector<128xf32>
    %39 = vector.shape_cast %38 : vector<128xf32> to vector<1x1x1x128xf32>
    %40 = vector.broadcast %39 : vector<1x1x1x128xf32> to vector<1x8x8x128xf32>
    %41 = arith.mulf %36, %40 : vector<1x8x8x128xf32>
    %42 = arith.addf %35, %41 : vector<1x8x8x128xf32>
    %c0_40 = arith.constant 0 : index
    %c0_41 = arith.constant 0 : index
    %c1_42 = arith.constant 1 : index
    %c0_43 = arith.constant 0 : index
    %43 = vector.load %arg19[%c0_40, %c0_41, %c1_42, %c0_43] : memref<1x10x10x128xf32, #tpu.memory_space<vmem>>, vector<1x8x8x128xf32>
    %44 = vector.extract_strided_slice %34 {offsets = [1, 0], sizes = [1, 128], strides = [1, 1]} : vector<9x128xf32> to vector<1x128xf32>
    %45 = vector.shape_cast %44 : vector<1x128xf32> to vector<128xf32>
    %46 = vector.shape_cast %45 : vector<128xf32> to vector<1x1x1x128xf32>
    %47 = vector.broadcast %46 : vector<1x1x1x128xf32> to vector<1x8x8x128xf32>
    %48 = arith.mulf %43, %47 : vector<1x8x8x128xf32>
    %49 = arith.addf %42, %48 : vector<1x8x8x128xf32>
    %c0_44 = arith.constant 0 : index
    %c0_45 = arith.constant 0 : index
    %c2 = arith.constant 2 : index
    %c0_46 = arith.constant 0 : index
    %50 = vector.load %arg19[%c0_44, %c0_45, %c2, %c0_46] : memref<1x10x10x128xf32, #tpu.memory_space<vmem>>, vector<1x8x8x128xf32>
    %51 = vector.extract_strided_slice %34 {offsets = [2, 0], sizes = [1, 128], strides = [1, 1]} : vector<9x128xf32> to vector<1x128xf32>
    %52 = vector.shape_cast %51 : vector<1x128xf32> to vector<128xf32>
    %53 = vector.shape_cast %52 : vector<128xf32> to vector<1x1x1x128xf32>
    %54 = vector.broadcast %53 : vector<1x1x1x128xf32> to vector<1x8x8x128xf32>
    %55 = arith.mulf %50, %54 : vector<1x8x8x128xf32>
    %56 = arith.addf %49, %55 : vector<1x8x8x128xf32>
    %c0_47 = arith.constant 0 : index
    %c1_48 = arith.constant 1 : index
    %c0_49 = arith.constant 0 : index
    %c0_50 = arith.constant 0 : index
    %57 = vector.load %arg19[%c0_47, %c1_48, %c0_49, %c0_50] : memref<1x10x10x128xf32, #tpu.memory_space<vmem>>, vector<1x8x8x128xf32>
    %58 = vector.extract_strided_slice %34 {offsets = [3, 0], sizes = [1, 128], strides = [1, 1]} : vector<9x128xf32> to vector<1x128xf32>
    %59 = vector.shape_cast %58 : vector<1x128xf32> to vector<128xf32>
    %60 = vector.shape_cast %59 : vector<128xf32> to vector<1x1x1x128xf32>
    %61 = vector.broadcast %60 : vector<1x1x1x128xf32> to vector<1x8x8x128xf32>
    %62 = arith.mulf %57, %61 : vector<1x8x8x128xf32>
    %63 = arith.addf %56, %62 : vector<1x8x8x128xf32>
    %c0_51 = arith.constant 0 : index
    %c1_52 = arith.constant 1 : index
    %c1_53 = arith.constant 1 : index
    %c0_54 = arith.constant 0 : index
    %64 = vector.load %arg19[%c0_51, %c1_52, %c1_53, %c0_54] : memref<1x10x10x128xf32, #tpu.memory_space<vmem>>, vector<1x8x8x128xf32>
    %65 = vector.extract_strided_slice %34 {offsets = [4, 0], sizes = [1, 128], strides = [1, 1]} : vector<9x128xf32> to vector<1x128xf32>
    %66 = vector.shape_cast %65 : vector<1x128xf32> to vector<128xf32>
    %67 = vector.shape_cast %66 : vector<128xf32> to vector<1x1x1x128xf32>
    %68 = vector.broadcast %67 : vector<1x1x1x128xf32> to vector<1x8x8x128xf32>
    %69 = arith.mulf %64, %68 : vector<1x8x8x128xf32>
    %70 = arith.addf %63, %69 : vector<1x8x8x128xf32>
    %c0_55 = arith.constant 0 : index
    %c1_56 = arith.constant 1 : index
    %c2_57 = arith.constant 2 : index
    %c0_58 = arith.constant 0 : index
    %71 = vector.load %arg19[%c0_55, %c1_56, %c2_57, %c0_58] : memref<1x10x10x128xf32, #tpu.memory_space<vmem>>, vector<1x8x8x128xf32>
    %72 = vector.extract_strided_slice %34 {offsets = [5, 0], sizes = [1, 128], strides = [1, 1]} : vector<9x128xf32> to vector<1x128xf32>
    %73 = vector.shape_cast %72 : vector<1x128xf32> to vector<128xf32>
    %74 = vector.shape_cast %73 : vector<128xf32> to vector<1x1x1x128xf32>
    %75 = vector.broadcast %74 : vector<1x1x1x128xf32> to vector<1x8x8x128xf32>
    %76 = arith.mulf %71, %75 : vector<1x8x8x128xf32>
    %77 = arith.addf %70, %76 : vector<1x8x8x128xf32>
    %c0_59 = arith.constant 0 : index
    %c2_60 = arith.constant 2 : index
    %c0_61 = arith.constant 0 : index
    %c0_62 = arith.constant 0 : index
    %78 = vector.load %arg19[%c0_59, %c2_60, %c0_61, %c0_62] : memref<1x10x10x128xf32, #tpu.memory_space<vmem>>, vector<1x8x8x128xf32>
    %79 = vector.extract_strided_slice %34 {offsets = [6, 0], sizes = [1, 128], strides = [1, 1]} : vector<9x128xf32> to vector<1x128xf32>
    %80 = vector.shape_cast %79 : vector<1x128xf32> to vector<128xf32>
    %81 = vector.shape_cast %80 : vector<128xf32> to vector<1x1x1x128xf32>
    %82 = vector.broadcast %81 : vector<1x1x1x128xf32> to vector<1x8x8x128xf32>
    %83 = arith.mulf %78, %82 : vector<1x8x8x128xf32>
    %84 = arith.addf %77, %83 : vector<1x8x8x128xf32>
    %c0_63 = arith.constant 0 : index
    %c2_64 = arith.constant 2 : index
    %c1_65 = arith.constant 1 : index
    %c0_66 = arith.constant 0 : index
    %85 = vector.load %arg19[%c0_63, %c2_64, %c1_65, %c0_66] : memref<1x10x10x128xf32, #tpu.memory_space<vmem>>, vector<1x8x8x128xf32>
    %86 = vector.extract_strided_slice %34 {offsets = [7, 0], sizes = [1, 128], strides = [1, 1]} : vector<9x128xf32> to vector<1x128xf32>
    %87 = vector.shape_cast %86 : vector<1x128xf32> to vector<128xf32>
    %88 = vector.shape_cast %87 : vector<128xf32> to vector<1x1x1x128xf32>
    %89 = vector.broadcast %88 : vector<1x1x1x128xf32> to vector<1x8x8x128xf32>
    %90 = arith.mulf %85, %89 : vector<1x8x8x128xf32>
    %91 = arith.addf %84, %90 : vector<1x8x8x128xf32>
    %c0_67 = arith.constant 0 : index
    %c2_68 = arith.constant 2 : index
    %c2_69 = arith.constant 2 : index
    %c0_70 = arith.constant 0 : index
    %92 = vector.load %arg19[%c0_67, %c2_68, %c2_69, %c0_70] : memref<1x10x10x128xf32, #tpu.memory_space<vmem>>, vector<1x8x8x128xf32>
    %93 = vector.extract_strided_slice %34 {offsets = [8, 0], sizes = [1, 128], strides = [1, 1]} : vector<9x128xf32> to vector<1x128xf32>
    %94 = vector.shape_cast %93 : vector<1x128xf32> to vector<128xf32>
    %95 = vector.shape_cast %94 : vector<128xf32> to vector<1x1x1x128xf32>
    %96 = vector.broadcast %95 : vector<1x1x1x128xf32> to vector<1x8x8x128xf32>
    %97 = arith.mulf %92, %96 : vector<1x8x8x128xf32>
    %98 = arith.addf %91, %97 : vector<1x8x8x128xf32>
    %c0_71 = arith.constant 0 : index
    %c0_72 = arith.constant 0 : index
    %99 = vector.load %arg7[%c0_71, %c0_72] : memref<1x128xf32, #tpu.memory_space<vmem>>, vector<1x128xf32>
    %100 = vector.shape_cast %99 : vector<1x128xf32> to vector<1x1x1x128xf32>
    %101 = vector.broadcast %100 : vector<1x1x1x128xf32> to vector<1x8x8x128xf32>
    %102 = arith.addf %98, %101 : vector<1x8x8x128xf32>
    %103 = arith.negf %102 : vector<1x8x8x128xf32>
    %104 = math.exp %103 : vector<1x8x8x128xf32>
    %cst_73 = arith.constant 1.000000e+00 : f32
    %105 = vector.broadcast %cst_73 : f32 to vector<1x8x8x128xf32>
    %106 = arith.addf %105, %104 : vector<1x8x8x128xf32>
    %107 = arith.divf %105, %106 : vector<1x8x8x128xf32>
    %108 = arith.mulf %102, %107 : vector<1x8x8x128xf32>
    %109 = vector.shape_cast %108 : vector<1x8x8x128xf32> to vector<1x64x128xf32>
    %cst_74 = arith.constant dense<0.000000e+00> : vector<1x128xf32>
    %110 = vector.multi_reduction <add>, %109, %cst_74 [1] : vector<1x64x128xf32> to vector<1x128xf32>
    %cst_75 = arith.constant 6.400000e+01 : f32
    %111 = vector.broadcast %cst_75 : f32 to vector<1x128xf32>
    %112 = arith.divf %110, %111 : vector<1x128xf32>
    %113 = arith.truncf %112 : vector<1x128xf32> to vector<1x128xbf16>
    %c0_76 = arith.constant 0 : index
    %c0_77 = arith.constant 0 : index
    %114 = vector.load %arg8[%c0_76, %c0_77] : memref<128x128xbf16, #tpu.memory_space<vmem>>, vector<128x128xbf16>
    %cst_78 = arith.constant dense<0.000000e+00> : vector<1x128xf32>
    %115 = tpu.matmul %113, %114, %cst_78 {dimension_numbers = #tpu.dot_dimension_numbers<[1], [0], [0], [1], [0, 0, 1, 1], [], []>} : vector<1x128xbf16>, vector<128x128xbf16>, vector<1x128xf32> -> vector<1x128xf32>
    %c0_79 = arith.constant 0 : index
    %c0_80 = arith.constant 0 : index
    %116 = vector.load %arg9[%c0_79, %c0_80] : memref<1x128xf32, #tpu.memory_space<vmem>>, vector<1x128xf32>
    %117 = arith.addf %115, %116 : vector<1x128xf32>
    %118 = arith.negf %117 : vector<1x128xf32>
    %119 = math.exp %118 : vector<1x128xf32>
    %cst_81 = arith.constant 1.000000e+00 : f32
    %120 = vector.broadcast %cst_81 : f32 to vector<1x128xf32>
    %121 = arith.addf %120, %119 : vector<1x128xf32>
    %122 = arith.divf %120, %121 : vector<1x128xf32>
    %123 = arith.mulf %117, %122 : vector<1x128xf32>
    %124 = arith.truncf %123 : vector<1x128xf32> to vector<1x128xbf16>
    %c0_82 = arith.constant 0 : index
    %c0_83 = arith.constant 0 : index
    %125 = vector.load %arg10[%c0_82, %c0_83] : memref<128x128xbf16, #tpu.memory_space<vmem>>, vector<128x128xbf16>
    %cst_84 = arith.constant dense<0.000000e+00> : vector<1x128xf32>
    %126 = tpu.matmul %124, %125, %cst_84 {dimension_numbers = #tpu.dot_dimension_numbers<[1], [0], [0], [1], [0, 0, 1, 1], [], []>} : vector<1x128xbf16>, vector<128x128xbf16>, vector<1x128xf32> -> vector<1x128xf32>
    %c0_85 = arith.constant 0 : index
    %c0_86 = arith.constant 0 : index
    %127 = vector.load %arg11[%c0_85, %c0_86] : memref<1x128xf32, #tpu.memory_space<vmem>>, vector<1x128xf32>
    %128 = arith.addf %126, %127 : vector<1x128xf32>
    %129 = arith.negf %128 : vector<1x128xf32>
    %130 = math.exp %129 : vector<1x128xf32>
    %cst_87 = arith.constant 1.000000e+00 : f32
    %131 = vector.broadcast %cst_87 : f32 to vector<1x128xf32>
    %132 = arith.addf %131, %130 : vector<1x128xf32>
    %133 = arith.divf %131, %132 : vector<1x128xf32>
    %134 = vector.shape_cast %133 : vector<1x128xf32> to vector<1x1x128xf32>
    %135 = vector.broadcast %134 : vector<1x1x128xf32> to vector<1x64x128xf32>
    %136 = arith.mulf %109, %135 : vector<1x64x128xf32>
    %137 = vector.shape_cast %136 : vector<1x64x128xf32> to vector<64x128xf32>
    %138 = arith.truncf %137 : vector<64x128xf32> to vector<64x128xbf16>
    %c0_88 = arith.constant 0 : index
    %c0_89 = arith.constant 0 : index
    %139 = vector.load %arg12[%c0_88, %c0_89] : memref<128x128xbf16, #tpu.memory_space<vmem>>, vector<128x128xbf16>
    %cst_90 = arith.constant dense<0.000000e+00> : vector<64x128xf32>
    %140 = tpu.matmul %138, %139, %cst_90 {dimension_numbers = #tpu.dot_dimension_numbers<[1], [0], [0], [1], [0, 0, 1, 1], [], []>} : vector<64x128xbf16>, vector<128x128xbf16>, vector<64x128xf32> -> vector<64x128xf32>
    %c0_91 = arith.constant 0 : index
    %c0_92 = arith.constant 0 : index
    %141 = vector.load %arg13[%c0_91, %c0_92] : memref<1x128xf32, #tpu.memory_space<vmem>>, vector<1x128xf32>
    %142 = vector.broadcast %141 : vector<1x128xf32> to vector<64x128xf32>
    %143 = arith.addf %140, %142 : vector<64x128xf32>
    %144 = arith.truncf %143 : vector<64x128xf32> to vector<64x128xbf16>
    %c0_93 = arith.constant 0 : index
    %c0_94 = arith.constant 0 : index
    %145 = vector.load %arg14[%c0_93, %c0_94] : memref<128x128xbf16, #tpu.memory_space<vmem>>, vector<128x128xbf16>
    %cst_95 = arith.constant dense<0.000000e+00> : vector<64x128xf32>
    %146 = tpu.matmul %144, %145, %cst_95 {dimension_numbers = #tpu.dot_dimension_numbers<[1], [0], [0], [1], [0, 0, 1, 1], [], []>} : vector<64x128xbf16>, vector<128x128xbf16>, vector<64x128xf32> -> vector<64x128xf32>
    %c0_96 = arith.constant 0 : index
    %c0_97 = arith.constant 0 : index
    %147 = vector.load %arg15[%c0_96, %c0_97] : memref<1x128xf32, #tpu.memory_space<vmem>>, vector<1x128xf32>
    %148 = vector.broadcast %147 : vector<1x128xf32> to vector<64x128xf32>
    %149 = arith.addf %146, %148 : vector<64x128xf32>
    %150 = arith.negf %149 : vector<64x128xf32>
    %151 = math.exp %150 : vector<64x128xf32>
    %cst_98 = arith.constant 1.000000e+00 : f32
    %152 = vector.broadcast %cst_98 : f32 to vector<64x128xf32>
    %153 = arith.addf %152, %151 : vector<64x128xf32>
    %154 = arith.divf %152, %153 : vector<64x128xf32>
    %155 = arith.mulf %149, %154 : vector<64x128xf32>
    %156 = vector.shape_cast %155 : vector<64x128xf32> to vector<1x64x128xf32>
    %cst_99 = arith.constant dense<0.000000e+00> : vector<1x128xf32>
    %157 = vector.multi_reduction <add>, %156, %cst_99 [1] : vector<1x64x128xf32> to vector<1x128xf32>
    %cst_100 = arith.constant 6.400000e+01 : f32
    %158 = vector.broadcast %cst_100 : f32 to vector<1x128xf32>
    %159 = arith.divf %157, %158 : vector<1x128xf32>
    %160 = arith.truncf %159 : vector<1x128xf32> to vector<1x128xbf16>
    %c0_101 = arith.constant 0 : index
    %c0_102 = arith.constant 0 : index
    %161 = vector.load %arg16[%c0_101, %c0_102] : memref<128x128xbf16, #tpu.memory_space<vmem>>, vector<128x128xbf16>
    %cst_103 = arith.constant dense<0.000000e+00> : vector<1x128xf32>
    %162 = tpu.matmul %160, %161, %cst_103 {dimension_numbers = #tpu.dot_dimension_numbers<[1], [0], [0], [1], [0, 0, 1, 1], [], []>} : vector<1x128xbf16>, vector<128x128xbf16>, vector<1x128xf32> -> vector<1x128xf32>
    %c0_104 = arith.constant 0 : index
    %c0_105 = arith.constant 0 : index
    %163 = vector.load %arg17[%c0_104, %c0_105] : memref<1x128xf32, #tpu.memory_space<vmem>>, vector<1x128xf32>
    %164 = arith.addf %162, %163 : vector<1x128xf32>
    %165 = vector.shape_cast %164 : vector<1x128xf32> to vector<1x1x128xf32>
    %c0_106 = arith.constant 0 : index
    %c0_107 = arith.constant 0 : index
    %c0_108 = arith.constant 0 : index
    %166 = vector.load %arg18[%c0_106, %c0_107, %c0_108] : memref<1x1x128xf32, #tpu.memory_space<vmem>>, vector<1x1x128xf32>
    tpu.vector_store %arg18[%c0_106, %c0_107, %c0_108], %165 {strides = array<i32>} : memref<1x1x128xf32, #tpu.memory_space<vmem>>, vector<1x1x128xf32>,
    return
  }
  func.func @transform_0(%arg0: i32) -> (i32, i32, i32) {
    %c0_i32 = arith.constant 0 : i32
    %c0_i32_0 = arith.constant 0 : i32
    %c0_i32_1 = arith.constant 0 : i32
    return %arg0, %c0_i32, %c0_i32_0 : i32, i32, i32
  }
  func.func @transform_1(%arg0: i32) -> (i32, i32) {
    %c0_i32 = arith.constant 0 : i32
    %c0_i32_0 = arith.constant 0 : i32
    %c0_i32_1 = arith.constant 0 : i32
    return %c0_i32, %c0_i32_0 : i32, i32
  }
  func.func @transform_2(%arg0: i32) -> (i32, i32) {
    %c0_i32 = arith.constant 0 : i32
    %c0_i32_0 = arith.constant 0 : i32
    %c0_i32_1 = arith.constant 0 : i32
    return %c0_i32, %c0_i32_0 : i32, i32
  }
  func.func @transform_3(%arg0: i32) -> (i32, i32) {
    %c0_i32 = arith.constant 0 : i32
    %c0_i32_0 = arith.constant 0 : i32
    %c0_i32_1 = arith.constant 0 : i32
    return %c0_i32, %c0_i32_0 : i32, i32
  }
  func.func @transform_4(%arg0: i32) -> (i32, i32) {
    %c0_i32 = arith.constant 0 : i32
    %c0_i32_0 = arith.constant 0 : i32
    %c0_i32_1 = arith.constant 0 : i32
    return %c0_i32, %c0_i32_0 : i32, i32
  }
  func.func @transform_5(%arg0: i32) -> (i32, i32) {
    %c0_i32 = arith.constant 0 : i32
    %c0_i32_0 = arith.constant 0 : i32
    %c0_i32_1 = arith.constant 0 : i32
    return %c0_i32, %c0_i32_0 : i32, i32
  }
  func.func @transform_6(%arg0: i32) -> (i32, i32) {
    %c0_i32 = arith.constant 0 : i32
    %c0_i32_0 = arith.constant 0 : i32
    %c0_i32_1 = arith.constant 0 : i32
    return %c0_i32, %c0_i32_0 : i32, i32
  }
  func.func @transform_7(%arg0: i32) -> (i32, i32) {
    %c0_i32 = arith.constant 0 : i32
    %c0_i32_0 = arith.constant 0 : i32
    %c0_i32_1 = arith.constant 0 : i32
    return %c0_i32, %c0_i32_0 : i32, i32
  }
  func.func @transform_8(%arg0: i32) -> (i32, i32) {
    %c0_i32 = arith.constant 0 : i32
    %c0_i32_0 = arith.constant 0 : i32
    %c0_i32_1 = arith.constant 0 : i32
    return %c0_i32, %c0_i32_0 : i32, i32
  }
  func.func @transform_9(%arg0: i32) -> (i32, i32) {
    %c0_i32 = arith.constant 0 : i32
    %c0_i32_0 = arith.constant 0 : i32
    %c0_i32_1 = arith.constant 0 : i32
    return %c0_i32, %c0_i32_0 : i32, i32
  }
  func.func @transform_10(%arg0: i32) -> (i32, i32) {
    %c0_i32 = arith.constant 0 : i32
    %c0_i32_0 = arith.constant 0 : i32
    %c0_i32_1 = arith.constant 0 : i32
    return %c0_i32, %c0_i32_0 : i32, i32
  }
  func.func @transform_11(%arg0: i32) -> (i32, i32) {
    %c0_i32 = arith.constant 0 : i32
    %c0_i32_0 = arith.constant 0 : i32
    %c0_i32_1 = arith.constant 0 : i32
    return %c0_i32, %c0_i32_0 : i32, i32
  }
  func.func @transform_12(%arg0: i32) -> (i32, i32) {
    %c0_i32 = arith.constant 0 : i32
    %c0_i32_0 = arith.constant 0 : i32
    %c0_i32_1 = arith.constant 0 : i32
    return %c0_i32, %c0_i32_0 : i32, i32
  }
  func.func @transform_13(%arg0: i32) -> (i32, i32) {
    %c0_i32 = arith.constant 0 : i32
    %c0_i32_0 = arith.constant 0 : i32
    %c0_i32_1 = arith.constant 0 : i32
    return %c0_i32, %c0_i32_0 : i32, i32
  }
  func.func @transform_14(%arg0: i32) -> (i32, i32) {
    %c0_i32 = arith.constant 0 : i32
    %c0_i32_0 = arith.constant 0 : i32
    %c0_i32_1 = arith.constant 0 : i32
    return %c0_i32, %c0_i32_0 : i32, i32
  }
  func.func @transform_15(%arg0: i32) -> (i32, i32) {
    %c0_i32 = arith.constant 0 : i32
    %c0_i32_0 = arith.constant 0 : i32
    %c0_i32_1 = arith.constant 0 : i32
    return %c0_i32, %c0_i32_0 : i32, i32
  }
  func.func @transform_16(%arg0: i32) -> (i32, i32) {
    %c0_i32 = arith.constant 0 : i32
    %c0_i32_0 = arith.constant 0 : i32
    %c0_i32_1 = arith.constant 0 : i32
    return %c0_i32, %c0_i32_0 : i32, i32
  }
  func.func @transform_17(%arg0: i32) -> (i32, i32, i32) {
    %c0_i32 = arith.constant 0 : i32
    %c0_i32_0 = arith.constant 0 : i32
    %c0_i32_1 = arith.constant 0 : i32
    return %arg0, %c0_i32, %c0_i32_0 : i32, i32, i32
  }
}

</mosaic_0001>

<llo_original>
// kernel: dr_model_forward.1
$region0: #{dr_model_forward.1}
  #allocation0 [shape = 'u32[]', space=smem, size = 0x4, offset = 0x4, fixed_abs, tag = 'smem constant byte address 0x4 - core index']
  #allocation1 [shape = 'u32[144,128]{1,0:T(1,128)}', space=vmem, size = 0x12000, scoped, tag = 'internal scratch']
  #allocation2 [shape = 'f32[1,10,10,128]{3,2,1,0:T(8,128)}', space=vmem, size = 0x14000, scoped, tag = 'scratch operand']
  %s0 = inlined_call_operand.vmem [shape: f32[2,64,128], index: 0, kind: input, shape index: {}]
  %s1 = inlined_call_operand.vmem [shape: bf16[128,128], index: 1, kind: input, shape index: {}]
  %s2 = inlined_call_operand.vmem [shape: f32[1,128], index: 2, kind: input, shape index: {}]
  %s3 = inlined_call_operand.vmem [shape: bf16[128,128], index: 3, kind: input, shape index: {}]
  %s4 = inlined_call_operand.vmem [shape: f32[1,128], index: 4, kind: input, shape index: {}]
  %s5 = inlined_call_operand.vmem [shape: f32[9,128], index: 5, kind: input, shape index: {}]
  %s6 = inlined_call_operand.vmem [shape: f32[1,128], index: 6, kind: input, shape index: {}]
  %s7 = inlined_call_operand.vmem [shape: bf16[128,128], index: 7, kind: input, shape index: {}]
  %s8 = inlined_call_operand.vmem [shape: f32[1,128], index: 8, kind: input, shape index: {}]
  %s9 = inlined_call_operand.vmem [shape: bf16[128,128], index: 9, kind: input, shape index: {}]
  %s10 = inlined_call_operand.vmem [shape: f32[1,128], index: 10, kind: input, shape index: {}]
  %s11 = inlined_call_operand.vmem [shape: bf16[128,128], index: 11, kind: input, shape index: {}]
  %s12 = inlined_call_operand.vmem [shape: f32[1,128], index: 12, kind: input, shape index: {}]
  %s13 = inlined_call_operand.vmem [shape: bf16[128,128], index: 13, kind: input, shape index: {}]
  %s14 = inlined_call_operand.vmem [shape: f32[1,128], index: 14, kind: input, shape index: {}]
  %s15 = inlined_call_operand.vmem [shape: bf16[128,128], index: 15, kind: input, shape index: {}]
  %s16 = inlined_call_operand.vmem [shape: f32[1,128], index: 16, kind: input, shape index: {}]
  %s17 = inlined_call_operand.vmem [shape: f32[2,1,128], index: 17, kind: output, shape index: {}]
  %s18 = sld [smem:[#allocation0]]
  $region101: #{dr_model_forward.1} parent=0
    _
  %s20 = ssub.s32 1, %s18
  %s21 = scalar_select 0, %s20, %s18
  loop: start=0, step=1, limit=4
  $region2: #{dr_model_forward.1} parent=0 // loop_pre_header
    _
  $region3: #{dr_model_forward.1} parent=0 // loop_header
    %s23 = sphi 0, %s27
    %p24 = scmp.ge.s32.totalorder %s23, 4
    %s33 = sphi 0, %s35
    %s36 = sphi 0, %s33
    %s37 = sphi 0, %s36
    %s53 = sphi 0, %s37
    %s57 = sphi 0, %s57
    %s59 = sphi 0, %s57
    %s60 = sphi 0, %s59
    %s74 = sphi 0, %s60
    %s78 = sphi 0, %s78
    %s80 = sphi 0, %s78
    %s81 = sphi 0, %s80
    %s95 = sphi 0, %s81
    %s99 = sphi 0, %s99
    %s101 = sphi 0, %s99
    %s102 = sphi 0, %s101
    %s116 = sphi 0, %s102
    %s120 = sphi 0, %s120
    %s122 = sphi 0, %s120
    %s123 = sphi 0, %s122
    %s137 = sphi 0, %s123
    %s141 = sphi 0, %s141
    %s143 = sphi 0, %s141
    %s144 = sphi 0, %s143
    %s158 = sphi 0, %s144
    %s162 = sphi 0, %s162
    %s164 = sphi 0, %s162
    %s165 = sphi 0, %s164
    %s179 = sphi 0, %s165
    %s183 = sphi 0, %s183
    %s185 = sphi 0, %s183
    %s186 = sphi 0, %s185
    %s200 = sphi 0, %s186
    %s204 = sphi 0, %s204
    %s206 = sphi 0, %s204
    %s207 = sphi 0, %s206
    %s221 = sphi 0, %s207
    %s225 = sphi 0, %s225
    %s227 = sphi 0, %s225
    %s228 = sphi 0, %s227
    %s242 = sphi 0, %s228
    %s246 = sphi 0, %s246
    %s248 = sphi 0, %s246
    %s249 = sphi 0, %s248
    %s263 = sphi 0, %s249
    %s267 = sphi 0, %s267
    %s269 = sphi 0, %s267
    %s270 = sphi 0, %s269
    %s284 = sphi 0, %s270
    %s288 = sphi 0, %s288
    %s290 = sphi 0, %s288
    %s291 = sphi 0, %s290
    %s305 = sphi 0, %s291
    %s309 = sphi 0, %s309
    %s311 = sphi 0, %s309
    %s312 = sphi 0, %s311
    %s326 = sphi 0, %s312
    %s330 = sphi 0, %s330
    %s332 = sphi 0, %s330
    %s333 = sphi 0, %s332
    %s347 = sphi 0, %s333
    %s351 = sphi 0, %s351
    %s353 = sphi 0, %s351
    %s354 = sphi 0, %s353
    %s368 = sphi 0, %s354
    %s372 = sphi 0, %s372
    %s374 = sphi 0, %s372
    %s375 = sphi 0, %s374
    %s389 = sphi 0, %s375
    %s395 = sphi 0, %s397
    %s398 = sphi 0, %s395
    %s399 = sphi 0, %s398
    %s415 = sphi 0, %s399
  $region4: #{dr_model_forward.1} parent=0 // loop_header_branch
    %26 = sbr.rel (%p24) target = $region8
  $region5: #{dr_model_forward.1} parent=0 // loop_body
    %s28 = ssub.s32 %s23, 1
    %s29 = ssub.s32 %s23, 2
    %s30 = sadd.s32 %s23, 1
    %s31 = ssub.s32 %s23, %s30
    %p32 = scmp.eq.s32.totalorder %s31, 0
    %s34 = sadd.s32 %s33, 1
    %s35 = scalar_select %p32, %s33, %s34
    %p38 = pneg %p32
    %p39 = scmp.eq.s32.totalorder %s23, 1
    %p40 = por %p38, %p39
    %p41 = scmp.ne.s32.totalorder %s33, %s36
    %p42 = scmp.eq.s32.totalorder %s23, 0
    %p43 = por %p41, %p42
    %p44 = scmp.ne.s32.totalorder %s33, %s36
    %p45 = scmp.eq.s32.totalorder %s28, 1
    %p46 = por %p44, %p45
    %p47 = scmp.ne.s32.totalorder %s36, %s37
    %p48 = scmp.eq.s32.totalorder %s28, 0
    %p49 = por %p47, %p48
    %p50 = scmp.ne.s32.totalorder %s36, %s37
    %p51 = scmp.eq.s32.totalorder %s29, 1
    %p52 = por %p50, %p51
    %p54 = scmp.ne.s32.totalorder %s37, %s53
    %p55 = scmp.eq.s32.totalorder %s29, 0
    %p56 = por %p54, %p55
    %s58 = sadd.s32 %s57, 1
    %p61 = scmp.eq.s32.totalorder %s23, 1
    %p62 = scmp.ne.s32.totalorder %s57, %s59
    %p63 = scmp.eq.s32.totalorder %s23, 0
    %p64 = por %p62, %p63
    %p65 = scmp.ne.s32.totalorder %s57, %s59
    %p66 = scmp.eq.s32.totalorder %s28, 1
    %p67 = por %p65, %p66
    %p68 = scmp.ne.s32.totalorder %s59, %s60
    %p69 = scmp.eq.s32.totalorder %s28, 0
    %p70 = por %p68, %p69
    %p71 = scmp.ne.s32.totalorder %s59, %s60
    %p72 = scmp.eq.s32.totalorder %s29, 1
    %p73 = por %p71, %p72
    %p75 = scmp.ne.s32.totalorder %s60, %s74
    %p76 = scmp.eq.s32.totalorder %s29, 0
    %p77 = por %p75, %p76
    %s79 = sadd.s32 %s78, 1
    %p82 = scmp.eq.s32.totalorder %s23, 1
    %p83 = scmp.ne.s32.totalorder %s78, %s80
    %p84 = scmp.eq.s32.totalorder %s23, 0
    %p85 = por %p83, %p84
    %p86 = scmp.ne.s32.totalorder %s78, %s80
    %p87 = scmp.eq.s32.totalorder %s28, 1
    %p88 = por %p86, %p87
    %p89 = scmp.ne.s32.totalorder %s80, %s81
    %p90 = scmp.eq.s32.totalorder %s28, 0
    %p91 = por %p89, %p90
    %p92 = scmp.ne.s32.totalorder %s80, %s81
    %p93 = scmp.eq.s32.totalorder %s29, 1
    %p94 = por %p92, %p93
    %p96 = scmp.ne.s32.totalorder %s81, %s95
    %p97 = scmp.eq.s32.totalorder %s29, 0
    %p98 = por %p96, %p97
    %s100 = sadd.s32 %s99, 1
    %p103 = scmp.eq.s32.totalorder %s23, 1
    %p104 = scmp.ne.s32.totalorder %s99, %s101
    %p105 = scmp.eq.s32.totalorder %s23, 0
    %p106 = por %p104, %p105
    %p107 = scmp.ne.s32.totalorder %s99, %s101
    %p108 = scmp.eq.s32.totalorder %s28, 1
    %p109 = por %p107, %p108
    %p110 = scmp.ne.s32.totalorder %s101, %s102
    %p111 = scmp.eq.s32.totalorder %s28, 0
    %p112 = por %p110, %p111
    %p113 = scmp.ne.s32.totalorder %s101, %s102
    %p114 = scmp.eq.s32.totalorder %s29, 1
    %p115 = por %p113, %p114
    %p117 = scmp.ne.s32.totalorder %s102, %s116
    %p118 = scmp.eq.s32.totalorder %s29, 0
    %p119 = por %p117, %p118
    %s121 = sadd.s32 %s120, 1
    %p124 = scmp.eq.s32.totalorder %s23, 1
    %p125 = scmp.ne.s32.totalorder %s120, %s122
    %p126 = scmp.eq.s32.totalorder %s23, 0
    %p127 = por %p125, %p126
    %p128 = scmp.ne.s32.totalorder %s120, %s122
    %p129 = scmp.eq.s32.totalorder %s28, 1
    %p130 = por %p128, %p129
    %p131 = scmp.ne.s32.totalorder %s122, %s123
    %p132 = scmp.eq.s32.totalorder %s28, 0
    %p133 = por %p131, %p132
    %p134 = scmp.ne.s32.totalorder %s122, %s123
    %p135 = scmp.eq.s32.totalorder %s29, 1
    %p136 = por %p134, %p135
    %p138 = scmp.ne.s32.totalorder %s123, %s137
    %p139 = scmp.eq.s32.totalorder %s29, 0
    %p140 = por %p138, %p139
    %s142 = sadd.s32 %s141, 1
    %p145 = scmp.eq.s32.totalorder %s23, 1
    %p146 = scmp.ne.s32.totalorder %s141, %s143
    %p147 = scmp.eq.s32.totalorder %s23, 0
    %p148 = por %p146, %p147
    %p149 = scmp.ne.s32.totalorder %s141, %s143
    %p150 = scmp.eq.s32.totalorder %s28, 1
    %p151 = por %p149, %p150
    %p152 = scmp.ne.s32.totalorder %s143, %s144
    %p153 = scmp.eq.s32.totalorder %s28, 0
    %p154 = por %p152, %p153
    %p155 = scmp.ne.s32.totalorder %s143, %s144
    %p156 = scmp.eq.s32.totalorder %s29, 1
    %p157 = por %p155, %p156
    %p159 = scmp.ne.s32.totalorder %s144, %s158
    %p160 = scmp.eq.s32.totalorder %s29, 0
    %p161 = por %p159, %p160
    %s163 = sadd.s32 %s162, 1
    %p166 = scmp.eq.s32.totalorder %s23, 1
    %p167 = scmp.ne.s32.totalorder %s162, %s164
    %p168 = scmp.eq.s32.totalorder %s23, 0
    %p169 = por %p167, %p168
    %p170 = scmp.ne.s32.totalorder %s162, %s164
    %p171 = scmp.eq.s32.totalorder %s28, 1
    %p172 = por %p170, %p171
    %p173 = scmp.ne.s32.totalorder %s164, %s165
    %p174 = scmp.eq.s32.totalorder %s28, 0
    %p175 = por %p173, %p174
    %p176 = scmp.ne.s32.totalorder %s164, %s165
    %p177 = scmp.eq.s32.totalorder %s29, 1
    %p178 = por %p176, %p177
    %p180 = scmp.ne.s32.totalorder %s165, %s179
    %p181 = scmp.eq.s32.totalorder %s29, 0
    %p182 = por %p180, %p181
    %s184 = sadd.s32 %s183, 1
    %p187 = scmp.eq.s32.totalorder %s23, 1
    %p188 = scmp.ne.s32.totalorder %s183, %s185
    %p189 = scmp.eq.s32.totalorder %s23, 0
    %p190 = por %p188, %p189
    %p191 = scmp.ne.s32.totalorder %s183, %s185
    %p192 = scmp.eq.s32.totalorder %s28, 1
    %p193 = por %p191, %p192
    %p194 = scmp.ne.s32.totalorder %s185, %s186
    %p195 = scmp.eq.s32.totalorder %s28, 0
    %p196 = por %p194, %p195
    %p197 = scmp.ne.s32.totalorder %s185, %s186
    %p198 = scmp.eq.s32.totalorder %s29, 1
    %p199 = por %p197, %p198
    %p201 = scmp.ne.s32.totalorder %s186, %s200
    %p202 = scmp.eq.s32.totalorder %s29, 0
    %p203 = por %p201, %p202
    %s205 = sadd.s32 %s204, 1
    %p208 = scmp.eq.s32.totalorder %s23, 1
    %p209 = scmp.ne.s32.totalorder %s204, %s206
    %p210 = scmp.eq.s32.totalorder %s23, 0
    %p211 = por %p209, %p210
    %p212 = scmp.ne.s32.totalorder %s204, %s206
    %p213 = scmp.eq.s32.totalorder %s28, 1
    %p214 = por %p212, %p213
    %p215 = scmp.ne.s32.totalorder %s206, %s207
    %p216 = scmp.eq.s32.totalorder %s28, 0
    %p217 = por %p215, %p216
    %p218 = scmp.ne.s32.totalorder %s206, %s207
    %p219 = scmp.eq.s32.totalorder %s29, 1
    %p220 = por %p218, %p219
    %p222 = scmp.ne.s32.totalorder %s207, %s221
    %p223 = scmp.eq.s32.totalorder %s29, 0
    %p224 = por %p222, %p223
    %s226 = sadd.s32 %s225, 1
    %p229 = scmp.eq.s32.totalorder %s23, 1
    %p230 = scmp.ne.s32.totalorder %s225, %s227
    %p231 = scmp.eq.s32.totalorder %s23, 0
    %p232 = por %p230, %p231
    %p233 = scmp.ne.s32.totalorder %s225, %s227
    %p234 = scmp.eq.s32.totalorder %s28, 1
    %p235 = por %p233, %p234
    %p236 = scmp.ne.s32.totalorder %s227, %s228
    %p237 = scmp.eq.s32.totalorder %s28, 0
    %p238 = por %p236, %p237
    %p239 = scmp.ne.s32.totalorder %s227, %s228
    %p240 = scmp.eq.s32.totalorder %s29, 1
    %p241 = por %p239, %p240
    %p243 = scmp.ne.s32.totalorder %s228, %s242
    %p244 = scmp.eq.s32.totalorder %s29, 0
    %p245 = por %p243, %p244
    %s247 = sadd.s32 %s246, 1
    %p250 = scmp.eq.s32.totalorder %s23, 1
    %p251 = scmp.ne.s32.totalorder %s246, %s248
    %p252 = scmp.eq.s32.totalorder %s23, 0
    %p253 = por %p251, %p252
    %p254 = scmp.ne.s32.totalorder %s246, %s248
    %p255 = scmp.eq.s32.totalorder %s28, 1
    %p256 = por %p254, %p255
    %p257 = scmp.ne.s32.totalorder %s248, %s249
    %p258 = scmp.eq.s32.totalorder %s28, 0
    %p259 = por %p257, %p258
    %p260 = scmp.ne.s32.totalorder %s248, %s249
    %p261 = scmp.eq.s32.totalorder %s29, 1
    %p262 = por %p260, %p261
    %p264 = scmp.ne.s32.totalorder %s249, %s263
    %p265 = scmp.eq.s32.totalorder %s29, 0
    %p266 = por %p264, %p265
    %s268 = sadd.s32 %s267, 1
    %p271 = scmp.eq.s32.totalorder %s23, 1
    %p272 = scmp.ne.s32.totalorder %s267, %s269
    %p273 = scmp.eq.s32.totalorder %s23, 0
    %p274 = por %p272, %p273
    %p275 = scmp.ne.s32.totalorder %s267, %s269
    %p276 = scmp.eq.s32.totalorder %s28, 1
    %p277 = por %p275, %p276
    %p278 = scmp.ne.s32.totalorder %s269, %s270
    %p279 = scmp.eq.s32.totalorder %s28, 0
    %p280 = por %p278, %p279
    %p281 = scmp.ne.s32.totalorder %s269, %s270
    %p282 = scmp.eq.s32.totalorder %s29, 1
    %p283 = por %p281, %p282
    %p285 = scmp.ne.s32.totalorder %s270, %s284
    %p286 = scmp.eq.s32.totalorder %s29, 0
    %p287 = por %p285, %p286
    %s289 = sadd.s32 %s288, 1
    %p292 = scmp.eq.s32.totalorder %s23, 1
    %p293 = scmp.ne.s32.totalorder %s288, %s290
    %p294 = scmp.eq.s32.totalorder %s23, 0
    %p295 = por %p293, %p294
    %p296 = scmp.ne.s32.totalorder %s288, %s290
    %p297 = scmp.eq.s32.totalorder %s28, 1
    %p298 = por %p296, %p297
    %p299 = scmp.ne.s32.totalorder %s290, %s291
    %p300 = scmp.eq.s32.totalorder %s28, 0
    %p301 = por %p299, %p300
    %p302 = scmp.ne.s32.totalorder %s290, %s291
    %p303 = scmp.eq.s32.totalorder %s29, 1
    %p304 = por %p302, %p303
    %p306 = scmp.ne.s32.totalorder %s291, %s305
    %p307 = scmp.eq.s32.totalorder %s29, 0
    %p308 = por %p306, %p307
    %s310 = sadd.s32 %s309, 1
    %p313 = scmp.eq.s32.totalorder %s23, 1
    %p314 = scmp.ne.s32.totalorder %s309, %s311
    %p315 = scmp.eq.s32.totalorder %s23, 0
    %p316 = por %p314, %p315
    %p317 = scmp.ne.s32.totalorder %s309, %s311
    %p318 = scmp.eq.s32.totalorder %s28, 1
    %p319 = por %p317, %p318
    %p320 = scmp.ne.s32.totalorder %s311, %s312
    %p321 = scmp.eq.s32.totalorder %s28, 0
    %p322 = por %p320, %p321
    %p323 = scmp.ne.s32.totalorder %s311, %s312
    %p324 = scmp.eq.s32.totalorder %s29, 1
    %p325 = por %p323, %p324
    %p327 = scmp.ne.s32.totalorder %s312, %s326
    %p328 = scmp.eq.s32.totalorder %s29, 0
    %p329 = por %p327, %p328
    %s331 = sadd.s32 %s330, 1
    %p334 = scmp.eq.s32.totalorder %s23, 1
    %p335 = scmp.ne.s32.totalorder %s330, %s332
    %p336 = scmp.eq.s32.totalorder %s23, 0
    %p337 = por %p335, %p336
    %p338 = scmp.ne.s32.totalorder %s330, %s332
    %p339 = scmp.eq.s32.totalorder %s28, 1
    %p340 = por %p338, %p339
    %p341 = scmp.ne.s32.totalorder %s332, %s333
    %p342 = scmp.eq.s32.totalorder %s28, 0
    %p343 = por %p341, %p342
    %p344 = scmp.ne.s32.totalorder %s332, %s333
    %p345 = scmp.eq.s32.totalorder %s29, 1
    %p346 = por %p344, %p345
    %p348 = scmp.ne.s32.totalorder %s333, %s347
    %p349 = scmp.eq.s32.totalorder %s29, 0
    %p350 = por %p348, %p349
    %s352 = sadd.s32 %s351, 1
    %p355 = scmp.eq.s32.totalorder %s23, 1
    %p356 = scmp.ne.s32.totalorder %s351, %s353
    %p357 = scmp.eq.s32.totalorder %s23, 0
    %p358 = por %p356, %p357
    %p359 = scmp.ne.s32.totalorder %s351, %s353
    %p360 = scmp.eq.s32.totalorder %s28, 1
    %p361 = por %p359, %p360
    %p362 = scmp.ne.s32.totalorder %s353, %s354
    %p363 = scmp.eq.s32.totalorder %s28, 0
    %p364 = por %p362, %p363
    %p365 = scmp.ne.s32.totalorder %s353, %s354
    %p366 = scmp.eq.s32.totalorder %s29, 1
    %p367 = por %p365, %p366
    %p369 = scmp.ne.s32.totalorder %s354, %s368
    %p370 = scmp.eq.s32.totalorder %s29, 0
    %p371 = por %p369, %p370
    %s373 = sadd.s32 %s372, 1
    %p376 = scmp.eq.s32.totalorder %s23, 1
    %p377 = scmp.ne.s32.totalorder %s372, %s374
    %p378 = scmp.eq.s32.totalorder %s23, 0
    %p379 = por %p377, %p378
    %p380 = scmp.ne.s32.totalorder %s372, %s374
    %p381 = scmp.eq.s32.totalorder %s28, 1
    %p382 = por %p380, %p381
    %p383 = scmp.ne.s32.totalorder %s374, %s375
    %p384 = scmp.eq.s32.totalorder %s28, 0
    %p385 = por %p383, %p384
    %p386 = scmp.ne.s32.totalorder %s374, %s375
    %p387 = scmp.eq.s32.totalorder %s29, 1
    %p388 = por %p386, %p387
    %p390 = scmp.ne.s32.totalorder %s375, %s389
    %p391 = scmp.eq.s32.totalorder %s29, 0
    %p392 = por %p390, %p391
    %s393 = ssub.s32 %s23, %s30
    %p394 = scmp.eq.s32.totalorder %s393, 0
    %s396 = sadd.s32 %s395, 1
    %s397 = scalar_select %p394, %s395, %s396
    %p400 = pneg %p394
    %p401 = scmp.eq.s32.totalorder %s23, 1
    %p402 = por %p400, %p401
    %p403 = scmp.ne.s32.totalorder %s395, %s398
    %p404 = scmp.eq.s32.totalorder %s23, 0
    %p405 = por %p403, %p404
    %p406 = scmp.ne.s32.totalorder %s395, %s398
    %p407 = scmp.eq.s32.totalorder %s28, 1
    %p408 = por %p406, %p407
    %p409 = scmp.ne.s32.totalorder %s398, %s399
    %p410 = scmp.eq.s32.totalorder %s28, 0
    %p411 = por %p409, %p410
    %p412 = scmp.ne.s32.totalorder %s398, %s399
    %p413 = scmp.eq.s32.totalorder %s29, 1
    %p414 = por %p412, %p413
    %p416 = scmp.ne.s32.totalorder %s399, %s415
    %p417 = scmp.eq.s32.totalorder %s29, 0
    %p418 = por %p416, %p417
    %p419 = scmp.le.s32.totalorder 1, %s23
    %p420 = scmp.lt.s32.totalorder %s23, 3
    %p421 = pnand %p419, %p420
    %p422 = pneg %p421
    // Predicated region
    $region9: #{dr_model_forward.1} parent=5 // pred_check
      _
    $region10: #{dr_model_forward.1} parent=5 // pred_check_branch
      %424 = sbr.rel (%p421) target = $region12
    $region11: #{dr_model_forward.1} parent=5 // pred_region
      %s425 = ssub.s32 %s23, 1
      // Predicated region
      $region13: #{dr_model_forward.1} parent=11 // pred_check
        %p426 = pneg %p70
      $region14: #{dr_model_forward.1} parent=11 // pred_check_branch
        %428 = sbr.rel (%p426) target = $region16
      $region15: #{dr_model_forward.1} parent=11 // pred_region
        _
      $region16: #{dr_model_forward.1} parent=11 // pred_fallthru
        _
      // Predicated region
      $region17: #{dr_model_forward.1} parent=11 // pred_check
        %p429 = pneg %p91
      $region18: #{dr_model_forward.1} parent=11 // pred_check_branch
        %431 = sbr.rel (%p429) target = $region20
      $region19: #{dr_model_forward.1} parent=11 // pred_region
        _
      $region20: #{dr_model_forward.1} parent=11 // pred_fallthru
        _
      // Predicated region
      $region21: #{dr_model_forward.1} parent=11 // pred_check
        %p432 = pneg %p112
      $region22: #{dr_model_forward.1} parent=11 // pred_check_branch
        %434 = sbr.rel (%p432) target = $region24
      $region23: #{dr_model_forward.1} parent=11 // pred_region
        _
      $region24: #{dr_model_forward.1} parent=11 // pred_fallthru
        _
      // Predicated region
      $region25: #{dr_model_forward.1} parent=11 // pred_check
        %p435 = pneg %p133
      $region26: #{dr_model_forward.1} parent=11 // pred_check_branch
        %437 = sbr.rel (%p435) target = $region28
      $region27: #{dr_model_forward.1} parent=11 // pred_region
        _
      $region28: #{dr_model_forward.1} parent=11 // pred_fallthru
        _
      // Predicated region
      $region29: #{dr_model_forward.1} parent=11 // pred_check
        %p438 = pneg %p154
      $region30: #{dr_model_forward.1} parent=11 // pred_check_branch
        %440 = sbr.rel (%p438) target = $region32
      $region31: #{dr_model_forward.1} parent=11 // pred_region
        _
      $region32: #{dr_model_forward.1} parent=11 // pred_fallthru
        _
      // Predicated region
      $region33: #{dr_model_forward.1} parent=11 // pred_check
        %p441 = pneg %p175
      $region34: #{dr_model_forward.1} parent=11 // pred_check_branch
        %443 = sbr.rel (%p441) target = $region36
      $region35: #{dr_model_forward.1} parent=11 // pred_region
        _
      $region36: #{dr_model_forward.1} parent=11 // pred_fallthru
        _
      // Predicated region
      $region37: #{dr_model_forward.1} parent=11 // pred_check
        %p444 = pneg %p196
      $region38: #{dr_model_forward.1} parent=11 // pred_check_branch
        %446 = sbr.rel (%p444) target = $region40
      $region39: #{dr_model_forward.1} parent=11 // pred_region
        _
      $region40: #{dr_model_forward.1} parent=11 // pred_fallthru
        _
      // Predicated region
      $region41: #{dr_model_forward.1} parent=11 // pred_check
        %p447 = pneg %p217
      $region42: #{dr_model_forward.1} parent=11 // pred_check_branch
        %449 = sbr.rel (%p447) target = $region44
      $region43: #{dr_model_forward.1} parent=11 // pred_region
        _
      $region44: #{dr_model_forward.1} parent=11 // pred_fallthru
        _
      // Predicated region
      $region45: #{dr_model_forward.1} parent=11 // pred_check
        %p450 = pneg %p238
      $region46: #{dr_model_forward.1} parent=11 // pred_check_branch
        %452 = sbr.rel (%p450) target = $region48
      $region47: #{dr_model_forward.1} parent=11 // pred_region
        _
      $region48: #{dr_model_forward.1} parent=11 // pred_fallthru
        _
      // Predicated region
      $region49: #{dr_model_forward.1} parent=11 // pred_check
        %p453 = pneg %p259
      $region50: #{dr_model_forward.1} parent=11 // pred_check_branch
        %455 = sbr.rel (%p453) target = $region52
      $region51: #{dr_model_forward.1} parent=11 // pred_region
        _
      $region52: #{dr_model_forward.1} parent=11 // pred_fallthru
        _
      // Predicated region
      $region53: #{dr_model_forward.1} parent=11 // pred_check
        %p456 = pneg %p280
      $region54: #{dr_model_forward.1} parent=11 // pred_check_branch
        %458 = sbr.rel (%p456) target = $region56
      $region55: #{dr_model_forward.1} parent=11 // pred_region
        _
      $region56: #{dr_model_forward.1} parent=11 // pred_fallthru
        _
      // Predicated region
      $region57: #{dr_model_forward.1} parent=11 // pred_check
        %p459 = pneg %p301
      $region58: #{dr_model_forward.1} parent=11 // pred_check_branch
        %461 = sbr.rel (%p459) target = $region60
      $region59: #{dr_model_forward.1} parent=11 // pred_region
        _
      $region60: #{dr_model_forward.1} parent=11 // pred_fallthru
        _
      // Predicated region
      $region61: #{dr_model_forward.1} parent=11 // pred_check
        %p462 = pneg %p322
      $region62: #{dr_model_forward.1} parent=11 // pred_check_branch
        %464 = sbr.rel (%p462) target = $region64
      $region63: #{dr_model_forward.1} parent=11 // pred_region
        _
      $region64: #{dr_model_forward.1} parent=11 // pred_fallthru
        _
      // Predicated region
      $region65: #{dr_model_forward.1} parent=11 // pred_check
        %p465 = pneg %p343
      $region66: #{dr_model_forward.1} parent=11 // pred_check_branch
        %467 = sbr.rel (%p465) target = $region68
      $region67: #{dr_model_forward.1} parent=11 // pred_region
        _
      $region68: #{dr_model_forward.1} parent=11 // pred_fallthru
        _
      // Predicated region
      $region69: #{dr_model_forward.1} parent=11 // pred_check
        %p468 = pneg %p364
      $region70: #{dr_model_forward.1} parent=11 // pred_check_branch
        %470 = sbr.rel (%p468) target = $region72
      $region71: #{dr_model_forward.1} parent=11 // pred_region
        _
      $region72: #{dr_model_forward.1} parent=11 // pred_fallthru
        _
      // Predicated region
      $region73: #{dr_model_forward.1} parent=11 // pred_check
        %p471 = pneg %p385
      $region74: #{dr_model_forward.1} parent=11 // pred_check_branch
        %473 = sbr.rel (%p471) target = $region76
      $region75: #{dr_model_forward.1} parent=11 // pred_region
        _
      $region76: #{dr_model_forward.1} parent=11 // pred_fallthru
        _
    $region12: #{dr_model_forward.1} parent=5 // pred_fallthru
      _
    %p474 = scmp.lt.s32.totalorder %s23, 2
    // Predicated region
    $region77: #{dr_model_forward.1} parent=5 // pred_check
      %p475 = pneg %p474
    $region78: #{dr_model_forward.1} parent=5 // pred_check_branch
      %477 = sbr.rel (%p475) target = $region80
    $region79: #{dr_model_forward.1} parent=5 // pred_region
      // Predicated region
      $region81: #{dr_model_forward.1} parent=79 // pred_check
        %p478 = pneg %p43
      $region82: #{dr_model_forward.1} parent=79 // pred_check_branch
        %480 = sbr.rel (%p478) target = $region84
      $region83: #{dr_model_forward.1} parent=79 // pred_region
        %p481 = scmp.lt.s32.totalorder %s23, 1
        %s482 = scalar_select %p481, %s23, 1
        %s483 = smul.addr %s482, 8
        %s484 = smul.addr %s483, 8
        %s485 = scalar_lea.vmem %s0, %s484
      $region84: #{dr_model_forward.1} parent=79 // pred_fallthru
        _
    $region80: #{dr_model_forward.1} parent=5 // pred_fallthru
      _
    %p486 = scmp.le.s32.totalorder 1, %s23
    %p487 = scmp.lt.s32.totalorder %s23, 3
    %p488 = pnand %p486, %p487
    %p489 = pneg %p488
    // Predicated region
    $region85: #{dr_model_forward.1} parent=5 // pred_check
      _
    $region86: #{dr_model_forward.1} parent=5 // pred_check_branch
      %491 = sbr.rel (%p488) target = $region88
    $region87: #{dr_model_forward.1} parent=5 // pred_region
      %s492 = ssub.s32 %s23, 1
      %p493 = scmp.lt.s32.totalorder %s28, 1
      %s494 = scalar_select %p493, %s28, 1
      %s495 = smul.addr %s494, 8
      %s496 = smul.addr %s495, 8
      %s497 = scalar_lea.vmem %s0, %s496
      %p498 = pneg %p49
      %p499 = pneg %p46
      %p500 = pneg %p70
      %p501 = pneg %p67
      %p502 = pneg %p91
      %p503 = pneg %p88
      %p504 = pneg %p112
      %p505 = pneg %p109
      %p506 = pneg %p133
      %p507 = pneg %p130
      %p508 = pneg %p154
      %p509 = pneg %p151
      %p510 = pneg %p175
      %p511 = pneg %p172
      %p512 = pneg %p196
      %p513 = pneg %p193
      %p514 = pneg %p217
      %p515 = pneg %p214
      %p516 = pneg %p238
      %p517 = pneg %p235
      %p518 = pneg %p259
      %p519 = pneg %p256
      %p520 = pneg %p280
      %p521 = pneg %p277
      %p522 = pneg %p301
      %p523 = pneg %p298
      %p524 = pneg %p322
      %p525 = pneg %p319
      %p526 = pneg %p343
      %p527 = pneg %p340
      %p528 = pneg %p364
      %p529 = pneg %p361
      %p530 = pneg %p385
      %p531 = pneg %p382
      %p532 = pneg %p411
      %p533 = pneg %p408
      %p534 = scmp.lt.s32.totalorder %s28, 1
      %s535 = scalar_select %p534, %s28, 1
      %s536 = scalar_lea.vmem %s17, %s535
      %p537 = scmp.lt.s32.totalorder %s28, 1
      %s538 = scalar_select %p537, %s28, 1
      %s539 = smul.addr %s538, 8
      %s540 = smul.addr %s539, 8
      %s541 = scalar_lea.vmem %s0, %s540
      %p542 = scmp.lt.s32.totalorder %s28, 1
      %s543 = scalar_select %p542, %s28, 1
      %s544 = scalar_lea.vmem %s17, %s543
      %v546 = vld [vmem:[%s541] sm:$0xff]
      %v547 = vld [vmem:[%s541 + $0x8] sm:$0xff]
      %v548 = vld [vmem:[%s541 + $0x10] sm:$0xff]
      %v549 = vld [vmem:[%s541 + $0x18] sm:$0xff]
      %v550 = vld [vmem:[%s541 + $0x20] sm:$0xff]
      %v551 = vld [vmem:[%s541 + $0x28] sm:$0xff]
      %v552 = vld [vmem:[%s541 + $0x30] sm:$0xff]
      %v553 = vld [vmem:[%s541 + $0x38] sm:$0xff]
      %v554 = vpack.c.bf16 %v547, %v546
      %v555 = vpack.c.bf16 %v549, %v548
      %v556 = vpack.c.bf16 %v551, %v550
      %v557 = vpack.c.bf16 %v553, %v552
      %v558 = vld [vmem:[%s1] sm:$0xf]
      %v559 = vld [vmem:[%s1 + $0x4] sm:$0xf]
      %v560 = vld [vmem:[%s1 + $0x8] sm:$0xf]
      %v561 = vld [vmem:[%s1 + $0xc] sm:$0xf]
      %v562 = vld [vmem:[%s1 + $0x10] sm:$0xf]
      %v563 = vld [vmem:[%s1 + $0x14] sm:$0xf]
      %v564 = vld [vmem:[%s1 + $0x18] sm:$0xf]
      %v565 = vld [vmem:[%s1 + $0x1c] sm:$0xf]
      %v566 = vld [vmem:[%s1 + $0x20] sm:$0xf]
      %v567 = vld [vmem:[%s1 + $0x24] sm:$0xf]
      %v568 = vld [vmem:[%s1 + $0x28] sm:$0xf]
      %v569 = vld [vmem:[%s1 + $0x2c] sm:$0xf]
      %v570 = vld [vmem:[%s1 + $0x30] sm:$0xf]
      %v571 = vld [vmem:[%s1 + $0x34] sm:$0xf]
      %v572 = vld [vmem:[%s1 + $0x38] sm:$0xf]
      %v573 = vld [vmem:[%s1 + $0x3c] sm:$0xf]
      %v574 = vld [vmem:[%s2] sm:$0x1]
      %v576 = vlaneseq
      %v577 = vshrl.u32 %v576, 7
      %v578 = vsub.s32 0, %v577
      %v579 = vrot.slane %v574, %v578
      %v597 = vunpack.c.l.b16 %v558
      %v598 = vunpack.c.l.b16 %v559
      %v599 = vunpack.c.l.b16 %v560
      %v600 = vunpack.c.l.b16 %v561
      %v601 = vunpack.c.l.b16 %v562
      %v602 = vunpack.c.l.b16 %v563
      %v603 = vunpack.c.l.b16 %v564
      %v604 = vunpack.c.l.b16 %v565
      %v605 = vunpack.c.l.b16 %v566
      %v606 = vunpack.c.l.b16 %v567
      %v607 = vunpack.c.l.b16 %v568
      %v608 = vunpack.c.l.b16 %v569
      %v609 = vunpack.c.l.b16 %v570
      %v610 = vunpack.c.l.b16 %v571
      %v611 = vunpack.c.l.b16 %v572
      %v612 = vunpack.c.l.b16 %v573
      %v613 = vpack.c.b16 %v598, %v597
      %v614 = vpack.c.b16 %v600, %v599
      %v615 = vpack.c.b16 %v602, %v601
      %v616 = vpack.c.b16 %v604, %v603
      %v617 = vpack.c.b16 %v606, %v605
      %v618 = vpack.c.b16 %v608, %v607
      %v619 = vpack.c.b16 %v610, %v609
      %v620 = vpack.c.b16 %v612, %v611
      %629 = vmatprep.subr.bf16.mxu0 0
      %630 = vmatpush1.bf16.msra.mxu0 %v613
      %631 = vmatprep.subr.bf16.mxu0 0
      %632 = vmatpush1.bf16.msra.mxu0 %v614
      %633 = vmatprep.subr.bf16.mxu0 0
      %634 = vmatpush1.bf16.msra.mxu0 %v615
      %635 = vmatprep.subr.bf16.mxu0 0
      %636 = vmatpush1.bf16.msra.mxu0 %v616
      %637 = vmatprep.subr.bf16.mxu0 0
      %638 = vmatpush1.bf16.msra.mxu0 %v617
      %639 = vmatprep.subr.bf16.mxu0 0
      %640 = vmatpush1.bf16.msra.mxu0 %v618
      %641 = vmatprep.subr.bf16.mxu0 0
      %642 = vmatpush1.bf16.msra.mxu0 %v619
      %643 = vmatprep.subr.bf16.mxu0 0
      %644 = vmatpush1.bf16.msra.mxu0 %v620
      %645 = vmatprep.subr.bf16.mxu0 0
      %646 = vmatpush1.bf16.msra.mxu0 0
      %647 = vmatprep.subr.bf16.mxu0 0
      %648 = vmatpush1.bf16.msra.mxu0 0
      %649 = vmatprep.subr.bf16.mxu0 0
      %650 = vmatpush1.bf16.msra.mxu0 0
      %651 = vmatprep.subr.bf16.mxu0 0
      %652 = vmatpush1.bf16.msra.mxu0 0
      %653 = vmatprep.subr.bf16.mxu0 0
      %654 = vmatpush1.bf16.msra.mxu0 0
      %655 = vmatprep.subr.bf16.mxu0 0
      %656 = vmatpush1.bf16.msra.mxu0 0
      %657 = vmatprep.subr.bf16.mxu0 0
      %658 = vmatpush1.bf16.msra.mxu0 0
      %659 = vmatprep.subr.bf16.mxu0 0
      %660 = vmatpush1.bf16.msra.mxu0 0
      %661 = vmatprep.mubr.bf16.mxu0 0
      %662 = vmatmul.mubr.bf16.gmra.mrb[0].mxu0 %v554
      %v663 = vpop.f32.mrb[0].mxu0
      %v664 = vadd.f32 %v579, %v663
      %v665 = vpop.f32.mrb[0].mxu0
      %v666 = vpop.f32.mrb[0].mxu0
      %v667 = vadd.f32 %v579, %v666
      %v668 = vpop.f32.mrb[0].mxu0
      %669 = vmatprep.mubr.bf16.mxu0 0
      %670 = vmatmul.mubr.bf16.gmra.mrb[0].mxu0 %v555
      %v671 = vpop.f32.mrb[0].mxu0
      %v672 = vadd.f32 %v579, %v671
      %v673 = vpop.f32.mrb[0].mxu0
      %v674 = vpop.f32.mrb[0].mxu0
      %v675 = vadd.f32 %v579, %v674
      %v676 = vpop.f32.mrb[0].mxu0
      %677 = vmatprep.mubr.bf16.mxu0 0
      %678 = vmatmul.mubr.bf16.gmra.mrb[0].mxu0 %v556
      %v679 = vpop.f32.mrb[0].mxu0
      %v680 = vadd.f32 %v579, %v679
      %v681 = vpop.f32.mrb[0].mxu0
      %v682 = vpop.f32.mrb[0].mxu0
      %v683 = vadd.f32 %v579, %v682
      %v684 = vpop.f32.mrb[0].mxu0
      %685 = vmatprep.mubr.bf16.mxu0 0
      %686 = vmatmul.mubr.bf16.gmra.mrb[0].mxu0 %v557
      %v687 = vpop.f32.mrb[0].mxu0
      %v688 = vadd.f32 %v579, %v687
      %v689 = vpop.f32.mrb[0].mxu0
      %v690 = vpop.f32.mrb[0].mxu0
      %v691 = vadd.f32 %v579, %v690
      %v692 = vpop.f32.mrb[0].mxu0
      %693 = vdwg.mxu0
      %v694 = vxor.u32 %v664, 2147483648
      %v695 = vxor.u32 %v667, 2147483648
      %v696 = vxor.u32 %v672, 2147483648
      %v697 = vxor.u32 %v675, 2147483648
      %v698 = vxor.u32 %v680, 2147483648
      %v699 = vxor.u32 %v683, 2147483648
      %v700 = vxor.u32 %v688, 2147483648
      %v701 = vxor.u32 %v691, 2147483648
      %v702 = vmul.f32 %v694, 1.442695
      %v703 = vpow.pop %v702
      %v704 = vmul.f32 %v695, 1.442695
      %v705 = vpow.pop %v704
      %v706 = vmul.f32 %v696, 1.442695
      %v707 = vpow.pop %v706
      %v708 = vmul.f32 %v697, 1.442695
      %v709 = vpow.pop %v708
      %v710 = vmul.f32 %v698, 1.442695
      %v711 = vpow.pop %v710
      %v712 = vmul.f32 %v699, 1.442695
      %v713 = vpow.pop %v712
      %v714 = vmul.f32 %v700, 1.442695
      %v715 = vpow.pop %v714
      %v716 = vmul.f32 %v701, 1.442695
      %v717 = vpow.pop %v716
      %v718 = vadd.f32 %v703, 1.0
      %v719 = vadd.f32 %v705, 1.0
      %v720 = vadd.f32 %v707, 1.0
      %v721 = vadd.f32 %v709, 1.0
      %v722 = vadd.f32 %v711, 1.0
      %v723 = vadd.f32 %v713, 1.0
      %v724 = vadd.f32 %v715, 1.0
      %v725 = vadd.f32 %v717, 1.0
      %v726 = vrcp.pop %v718
      %v727 = vmul.f32 1.0, %v726
      %v728 = vrcp.pop %v719
      %v729 = vmul.f32 1.0, %v728
      %v730 = vrcp.pop %v720
      %v731 = vmul.f32 1.0, %v730
      %v732 = vrcp.pop %v721
      %v733 = vmul.f32 1.0, %v732
      %v734 = vrcp.pop %v722
      %v735 = vmul.f32 1.0, %v734
      %v736 = vrcp.pop %v723
      %v737 = vmul.f32 1.0, %v736
      %v738 = vrcp.pop %v724
      %v739 = vmul.f32 1.0, %v738
      %v740 = vrcp.pop %v725
      %v741 = vmul.f32 1.0, %v740
      %v742 = vmul.f32 %v664, %v727
      %v743 = vmul.f32 %v667, %v729
      %v744 = vmul.f32 %v672, %v731
      %v745 = vmul.f32 %v675, %v733
      %v746 = vmul.f32 %v680, %v735
      %v747 = vmul.f32 %v683, %v737
      %v748 = vmul.f32 %v688, %v739
      %v749 = vmul.f32 %v691, %v741
      %v750 = vpack.c.bf16 %v743, %v742
      %v751 = vpack.c.bf16 %v745, %v744
      %v752 = vpack.c.bf16 %v747, %v746
      %v753 = vpack.c.bf16 %v749, %v748
      %v754 = vld [vmem:[%s3] sm:$0xf]
      %v755 = vld [vmem:[%s3 + $0x4] sm:$0xf]
      %v756 = vld [vmem:[%s3 + $0x8] sm:$0xf]
      %v757 = vld [vmem:[%s3 + $0xc] sm:$0xf]
      %v758 = vld [vmem:[%s3 + $0x10] sm:$0xf]
      %v759 = vld [vmem:[%s3 + $0x14] sm:$0xf]
      %v760 = vld [vmem:[%s3 + $0x18] sm:$0xf]
      %v761 = vld [vmem:[%s3 + $0x1c] sm:$0xf]
      %v762 = vld [vmem:[%s3 + $0x20] sm:$0xf]
      %v763 = vld [vmem:[%s3 + $0x24] sm:$0xf]
      %v764 = vld [vmem:[%s3 + $0x28] sm:$0xf]
      %v765 = vld [vmem:[%s3 + $0x2c] sm:$0xf]
      %v766 = vld [vmem:[%s3 + $0x30] sm:$0xf]
      %v767 = vld [vmem:[%s3 + $0x34] sm:$0xf]
      %v768 = vld [vmem:[%s3 + $0x38] sm:$0xf]
      %v769 = vld [vmem:[%s3 + $0x3c] sm:$0xf]
      %v770 = vld [vmem:[%s4] sm:$0x1]
      %v772 = vlaneseq
      %v773 = vshrl.u32 %v772, 7
      %v774 = vsub.s32 0, %v773
      %v775 = vrot.slane %v770, %v774
      %v793 = vunpack.c.l.b16 %v754
      %v794 = vunpack.c.l.b16 %v755
      %v795 = vunpack.c.l.b16 %v756
      %v796 = vunpack.c.l.b16 %v757
      %v797 = vunpack.c.l.b16 %v758
      %v798 = vunpack.c.l.b16 %v759
      %v799 = vunpack.c.l.b16 %v760
      %v800 = vunpack.c.l.b16 %v761
      %v801 = vunpack.c.l.b16 %v762
      %v802 = vunpack.c.l.b16 %v763
      %v803 = vunpack.c.l.b16 %v764
      %v804 = vunpack.c.l.b16 %v765
      %v805 = vunpack.c.l.b16 %v766
      %v806 = vunpack.c.l.b16 %v767
      %v807 = vunpack.c.l.b16 %v768
      %v808 = vunpack.c.l.b16 %v769
      %v809 = vpack.c.b16 %v794, %v793
      %v810 = vpack.c.b16 %v796, %v795
      %v811 = vpack.c.b16 %v798, %v797
      %v812 = vpack.c.b16 %v800, %v799
      %v813 = vpack.c.b16 %v802, %v801
      %v814 = vpack.c.b16 %v804, %v803
      %v815 = vpack.c.b16 %v806, %v805
      %v816 = vpack.c.b16 %v808, %v807
      %825 = vmatprep.subr.bf16.mxu0 0
      %826 = vmatpush1.bf16.msra.mxu0 %v809
      %827 = vmatprep.subr.bf16.mxu0 0
      %828 = vmatpush1.bf16.msra.mxu0 %v810
      %829 = vmatprep.subr.bf16.mxu0 0
      %830 = vmatpush1.bf16.msra.mxu0 %v811
      %831 = vmatprep.subr.bf16.mxu0 0
      %832 = vmatpush1.bf16.msra.mxu0 %v812
      %833 = vmatprep.subr.bf16.mxu0 0
      %834 = vmatpush1.bf16.msra.mxu0 %v813
      %835 = vmatprep.subr.bf16.mxu0 0
      %836 = vmatpush1.bf16.msra.mxu0 %v814
      %837 = vmatprep.subr.bf16.mxu0 0
      %838 = vmatpush1.bf16.msra.mxu0 %v815
      %839 = vmatprep.subr.bf16.mxu0 0
      %840 = vmatpush1.bf16.msra.mxu0 %v816
      %841 = vmatprep.subr.bf16.mxu0 0
      %842 = vmatpush1.bf16.msra.mxu0 0
      %843 = vmatprep.subr.bf16.mxu0 0
      %844 = vmatpush1.bf16.msra.mxu0 0
      %845 = vmatprep.subr.bf16.mxu0 0
      %846 = vmatpush1.bf16.msra.mxu0 0
      %847 = vmatprep.subr.bf16.mxu0 0
      %848 = vmatpush1.bf16.msra.mxu0 0
      %849 = vmatprep.subr.bf16.mxu0 0
      %850 = vmatpush1.bf16.msra.mxu0 0
      %851 = vmatprep.subr.bf16.mxu0 0
      %852 = vmatpush1.bf16.msra.mxu0 0
      %853 = vmatprep.subr.bf16.mxu0 0
      %854 = vmatpush1.bf16.msra.mxu0 0
      %855 = vmatprep.subr.bf16.mxu0 0
      %856 = vmatpush1.bf16.msra.mxu0 0
      %857 = vmatprep.mubr.bf16.mxu0 0
      %858 = vmatmul.mubr.bf16.gmra.mrb[0].mxu0 %v750
      %v859 = vpop.f32.mrb[0].mxu0
      %v860 = vadd.f32 %v775, %v859
      %v861 = vpop.f32.mrb[0].mxu0
      %v862 = vpop.f32.mrb[0].mxu0
      %v863 = vadd.f32 %v775, %v862
      %v864 = vpop.f32.mrb[0].mxu0
      %865 = vmatprep.mubr.bf16.mxu0 0
      %866 = vmatmul.mubr.bf16.gmra.mrb[0].mxu0 %v751
      %v867 = vpop.f32.mrb[0].mxu0
      %v868 = vadd.f32 %v775, %v867
      %v869 = vpop.f32.mrb[0].mxu0
      %v870 = vpop.f32.mrb[0].mxu0
      %v871 = vadd.f32 %v775, %v870
      %v872 = vpop.f32.mrb[0].mxu0
      %873 = vmatprep.mubr.bf16.mxu0 0
      %874 = vmatmul.mubr.bf16.gmra.mrb[0].mxu0 %v752
      %v875 = vpop.f32.mrb[0].mxu0
      %v876 = vadd.f32 %v775, %v875
      %v877 = vpop.f32.mrb[0].mxu0
      %v878 = vpop.f32.mrb[0].mxu0
      %v879 = vadd.f32 %v775, %v878
      %v880 = vpop.f32.mrb[0].mxu0
      %881 = vmatprep.mubr.bf16.mxu0 0
      %882 = vmatmul.mubr.bf16.gmra.mrb[0].mxu0 %v753
      %v883 = vpop.f32.mrb[0].mxu0
      %v884 = vadd.f32 %v775, %v883
      %v885 = vpop.f32.mrb[0].mxu0
      %v886 = vpop.f32.mrb[0].mxu0
      %v887 = vadd.f32 %v775, %v886
      %v888 = vpop.f32.mrb[0].mxu0
      %889 = vdwg.mxu0
      %v890 = vxor.u32 %v860, 2147483648
      %v891 = vxor.u32 %v863, 2147483648
      %v892 = vxor.u32 %v868, 2147483648
      %v893 = vxor.u32 %v871, 2147483648
      %v894 = vxor.u32 %v876, 2147483648
      %v895 = vxor.u32 %v879, 2147483648
      %v896 = vxor.u32 %v884, 2147483648
      %v897 = vxor.u32 %v887, 2147483648
      %v898 = vmul.f32 %v890, 1.442695
      %v899 = vpow.pop %v898
      %v900 = vmul.f32 %v891, 1.442695
      %v901 = vpow.pop %v900
      %v902 = vmul.f32 %v892, 1.442695
      %v903 = vpow.pop %v902
      %v904 = vmul.f32 %v893, 1.442695
      %v905 = vpow.pop %v904
      %v906 = vmul.f32 %v894, 1.442695
      %v907 = vpow.pop %v906
      %v908 = vmul.f32 %v895, 1.442695
      %v909 = vpow.pop %v908
      %v910 = vmul.f32 %v896, 1.442695
      %v911 = vpow.pop %v910
      %v912 = vmul.f32 %v897, 1.442695
      %v913 = vpow.pop %v912
      %v914 = vadd.f32 %v899, 1.0
      %v915 = vadd.f32 %v901, 1.0
      %v916 = vadd.f32 %v903, 1.0
      %v917 = vadd.f32 %v905, 1.0
      %v918 = vadd.f32 %v907, 1.0
      %v919 = vadd.f32 %v909, 1.0
      %v920 = vadd.f32 %v911, 1.0
      %v921 = vadd.f32 %v913, 1.0
      %v922 = vrcp.pop %v914
      %v923 = vmul.f32 1.0, %v922
      %v924 = vrcp.pop %v915
      %v925 = vmul.f32 1.0, %v924
      %v926 = vrcp.pop %v916
      %v927 = vmul.f32 1.0, %v926
      %v928 = vrcp.pop %v917
      %v929 = vmul.f32 1.0, %v928
      %v930 = vrcp.pop %v918
      %v931 = vmul.f32 1.0, %v930
      %v932 = vrcp.pop %v919
      %v933 = vmul.f32 1.0, %v932
      %v934 = vrcp.pop %v920
      %v935 = vmul.f32 1.0, %v934
      %v936 = vrcp.pop %v921
      %v937 = vmul.f32 1.0, %v936
      %v938 = vmul.f32 %v860, %v923
      %v939 = vmul.f32 %v863, %v925
      %v940 = vmul.f32 %v868, %v927
      %v941 = vmul.f32 %v871, %v929
      %v942 = vmul.f32 %v876, %v931
      %v943 = vmul.f32 %v879, %v933
      %v944 = vmul.f32 %v884, %v935
      %v945 = vmul.f32 %v887, %v937
      %946 = vst [vmem:[#allocation2] sm:$0xff] 0.0
      %947 = vst [vmem:[#allocation2 + $0x8] sm:$0x3] 0.0
      %s948 = scalar_lea.vmem [#allocation2], 144
      %949 = vst [vmem:[%s948] sm:$0xff] 0.0
      %950 = vst [vmem:[%s948 + $0x8] sm:$0x3] 0.0
      %s951 = scalar_lea.vmem [#allocation2], 16
      %952 = vst [vmem:[%s951] sm:$0x1] 0.0
      %953 = vst [vmem:[%s951 + $0x10] sm:$0x1] 0.0
      %954 = vst [vmem:[%s951 + $0x20] sm:$0x1] 0.0
      %955 = vst [vmem:[%s951 + $0x30] sm:$0x1] 0.0
      %956 = vst [vmem:[%s951 + $0x40] sm:$0x1] 0.0
      %957 = vst [vmem:[%s951 + $0x50] sm:$0x1] 0.0
      %958 = vst [vmem:[%s951 + $0x60] sm:$0x1] 0.0
      %959 = vst [vmem:[%s951 + $0x70] sm:$0x1] 0.0
      %960 = vst [vmem:[%s951 + $0x9] sm:$0x1] 0.0
      %961 = vst [vmem:[%s951 + $0x19] sm:$0x1] 0.0
      %962 = vst [vmem:[%s951 + $0x29] sm:$0x1] 0.0
      %963 = vst [vmem:[%s951 + $0x39] sm:$0x1] 0.0
      %964 = vst [vmem:[%s951 + $0x49] sm:$0x1] 0.0
      %965 = vst [vmem:[%s951 + $0x59] sm:$0x1] 0.0
      %966 = vst [vmem:[%s951 + $0x69] sm:$0x1] 0.0
      %967 = vst [vmem:[%s951 + $0x79] sm:$0x1] 0.0
      %968 = vst [vmem:[%s951 + $0x1] sm:$0xff] %v938
      %969 = vst [vmem:[%s951 + $0x11] sm:$0xff] %v939
      %970 = vst [vmem:[%s951 + $0x21] sm:$0xff] %v940
      %971 = vst [vmem:[%s951 + $0x31] sm:$0xff] %v941
      %972 = vst [vmem:[%s951 + $0x41] sm:$0xff] %v942
      %973 = vst [vmem:[%s951 + $0x51] sm:$0xff] %v943
      %974 = vst [vmem:[%s951 + $0x61] sm:$0xff] %v944
      %975 = vst [vmem:[%s951 + $0x71] sm:$0xff] %v945
      %v976 = vld [vmem:[%s5] sm:$0xff]
      %v977 = vld [vmem:[%s5 + $0x8] sm:$0x1]
      %v978 = vld [vmem:[#allocation2] sm:$0xff]
      %v979 = vld [vmem:[#allocation2 + $0x10] sm:$0xff]
      %v980 = vld [vmem:[#allocation2 + $0x20] sm:$0xff]
      %v981 = vld [vmem:[#allocation2 + $0x30] sm:$0xff]
      %v982 = vld [vmem:[#allocation2 + $0x40] sm:$0xff]
      %v983 = vld [vmem:[#allocation2 + $0x50] sm:$0xff]
      %v984 = vld [vmem:[#allocation2 + $0x60] sm:$0xff]
      %v985 = vld [vmem:[#allocation2 + $0x70] sm:$0xff]
      %v986 = vlaneseq
      %v987 = vshrl.u32 %v986, 7
      %v988 = vsub.s32 0, %v987
      %v989 = vrot.slane %v976, %v988
      %v990 = vmul.f32 %v978, %v989
      %v991 = vmul.f32 %v979, %v989
      %v992 = vmul.f32 %v980, %v989
      %v993 = vmul.f32 %v981, %v989
      %v994 = vmul.f32 %v982, %v989
      %v995 = vmul.f32 %v983, %v989
      %v996 = vmul.f32 %v984, %v989
      %v997 = vmul.f32 %v985, %v989
      %v998 = vadd.f32 %v990, 0.0
      %v999 = vadd.f32 %v991, 0.0
      %v1000 = vadd.f32 %v992, 0.0
      %v1001 = vadd.f32 %v993, 0.0
      %v1002 = vadd.f32 %v994, 0.0
      %v1003 = vadd.f32 %v995, 0.0
      %v1004 = vadd.f32 %v996, 0.0
      %v1005 = vadd.f32 %v997, 0.0
      %v1006 = vld [vmem:[#allocation2 + $0x1] sm:$0xff]
      %v1007 = vld [vmem:[#allocation2 + $0x11] sm:$0xff]
      %v1008 = vld [vmem:[#allocation2 + $0x21] sm:$0xff]
      %v1009 = vld [vmem:[#allocation2 + $0x31] sm:$0xff]
      %v1010 = vld [vmem:[#allocation2 + $0x41] sm:$0xff]
      %v1011 = vld [vmem:[#allocation2 + $0x51] sm:$0xff]
      %v1012 = vld [vmem:[#allocation2 + $0x61] sm:$0xff]
      %v1013 = vld [vmem:[#allocation2 + $0x71] sm:$0xff]
      %v1014 = vlaneseq
      %v1015 = vshrl.u32 %v1014, 7
      %v1016 = vsub.s32 1, %v1015
      %v1017 = vrot.slane %v976, %v1016
      %v1018 = vmul.f32 %v1006, %v1017
      %v1019 = vmul.f32 %v1007, %v1017
      %v1020 = vmul.f32 %v1008, %v1017
      %v1021 = vmul.f32 %v1009, %v1017
      %v1022 = vmul.f32 %v1010, %v1017
      %v1023 = vmul.f32 %v1011, %v1017
      %v1024 = vmul.f32 %v1012, %v1017
      %v1025 = vmul.f32 %v1013, %v1017
      %v1026 = vadd.f32 %v998, %v1018
      %v1027 = vadd.f32 %v999, %v1019
      %v1028 = vadd.f32 %v1000, %v1020
      %v1029 = vadd.f32 %v1001, %v1021
      %v1030 = vadd.f32 %v1002, %v1022
      %v1031 = vadd.f32 %v1003, %v1023
      %v1032 = vadd.f32 %v1004, %v1024
      %v1033 = vadd.f32 %v1005, %v1025
      %v1034 = vld [vmem:[#allocation2 + $0x2] sm:$0xff]
      %v1035 = vld [vmem:[#allocation2 + $0x12] sm:$0xff]
      %v1036 = vld [vmem:[#allocation2 + $0x22] sm:$0xff]
      %v1037 = vld [vmem:[#allocation2 + $0x32] sm:$0xff]
      %v1038 = vld [vmem:[#allocation2 + $0x42] sm:$0xff]
      %v1039 = vld [vmem:[#allocation2 + $0x52] sm:$0xff]
      %v1040 = vld [vmem:[#allocation2 + $0x62] sm:$0xff]
      %v1041 = vld [vmem:[#allocation2 + $0x72] sm:$0xff]
      %v1042 = vlaneseq
      %v1043 = vshrl.u32 %v1042, 7
      %v1044 = vsub.s32 2, %v1043
      %v1045 = vrot.slane %v976, %v1044
      %v1046 = vmul.f32 %v1034, %v1045
      %v1047 = vmul.f32 %v1035, %v1045
      %v1048 = vmul.f32 %v1036, %v1045
      %v1049 = vmul.f32 %v1037, %v1045
      %v1050 = vmul.f32 %v1038, %v1045
      %v1051 = vmul.f32 %v1039, %v1045
      %v1052 = vmul.f32 %v1040, %v1045
      %v1053 = vmul.f32 %v1041, %v1045
      %v1054 = vadd.f32 %v1026, %v1046
      %v1055 = vadd.f32 %v1027, %v1047
      %v1056 = vadd.f32 %v1028, %v1048
      %v1057 = vadd.f32 %v1029, %v1049
      %v1058 = vadd.f32 %v1030, %v1050
      %v1059 = vadd.f32 %v1031, %v1051
      %v1060 = vadd.f32 %v1032, %v1052
      %v1061 = vadd.f32 %v1033, %v1053
      %v1062 = vld [vmem:[%s951] sm:$0xff]
      %v1063 = vld [vmem:[%s951 + $0x10] sm:$0xff]
      %v1064 = vld [vmem:[%s951 + $0x20] sm:$0xff]
      %v1065 = vld [vmem:[%s951 + $0x30] sm:$0xff]
      %v1066 = vld [vmem:[%s951 + $0x40] sm:$0xff]
      %v1067 = vld [vmem:[%s951 + $0x50] sm:$0xff]
      %v1068 = vld [vmem:[%s951 + $0x60] sm:$0xff]
      %v1069 = vld [vmem:[%s951 + $0x70] sm:$0xff]
      %v1070 = vlaneseq
      %v1071 = vshrl.u32 %v1070, 7
      %v1072 = vsub.s32 3, %v1071
      %v1073 = vrot.slane %v976, %v1072
      %v1074 = vmul.f32 %v1062, %v1073
      %v1075 = vmul.f32 %v1063, %v1073
      %v1076 = vmul.f32 %v1064, %v1073
      %v1077 = vmul.f32 %v1065, %v1073
      %v1078 = vmul.f32 %v1066, %v1073
      %v1079 = vmul.f32 %v1067, %v1073
      %v1080 = vmul.f32 %v1068, %v1073
      %v1081 = vmul.f32 %v1069, %v1073
      %v1082 = vadd.f32 %v1054, %v1074
      %v1083 = vadd.f32 %v1055, %v1075
      %v1084 = vadd.f32 %v1056, %v1076
      %v1085 = vadd.f32 %v1057, %v1077
      %v1086 = vadd.f32 %v1058, %v1078
      %v1087 = vadd.f32 %v1059, %v1079
      %v1088 = vadd.f32 %v1060, %v1080
      %v1089 = vadd.f32 %v1061, %v1081
      %v1090 = vld [vmem:[%s951 + $0x1] sm:$0xff]
      %v1091 = vld [vmem:[%s951 + $0x11] sm:$0xff]
      %v1092 = vld [vmem:[%s951 + $0x21] sm:$0xff]
      %v1093 = vld [vmem:[%s951 + $0x31] sm:$0xff]
      %v1094 = vld [vmem:[%s951 + $0x41] sm:$0xff]
      %v1095 = vld [vmem:[%s951 + $0x51] sm:$0xff]
      %v1096 = vld [vmem:[%s951 + $0x61] sm:$0xff]
      %v1097 = vld [vmem:[%s951 + $0x71] sm:$0xff]
      %v1098 = vlaneseq
      %v1099 = vshrl.u32 %v1098, 7
      %v1100 = vsub.s32 4, %v1099
      %v1101 = vrot.slane %v976, %v1100
      %v1102 = vmul.f32 %v1090, %v1101
      %v1103 = vmul.f32 %v1091, %v1101
      %v1104 = vmul.f32 %v1092, %v1101
      %v1105 = vmul.f32 %v1093, %v1101
      %v1106 = vmul.f32 %v1094, %v1101
      %v1107 = vmul.f32 %v1095, %v1101
      %v1108 = vmul.f32 %v1096, %v1101
      %v1109 = vmul.f32 %v1097, %v1101
      %v1110 = vadd.f32 %v1082, %v1102
      %v1111 = vadd.f32 %v1083, %v1103
      %v1112 = vadd.f32 %v1084, %v1104
      %v1113 = vadd.f32 %v1085, %v1105
      %v1114 = vadd.f32 %v1086, %v1106
      %v1115 = vadd.f32 %v1087, %v1107
      %v1116 = vadd.f32 %v1088, %v1108
      %v1117 = vadd.f32 %v1089, %v1109
      %v1118 = vld [vmem:[%s951 + $0x2] sm:$0xff]
      %v1119 = vld [vmem:[%s951 + $0x12] sm:$0xff]
      %v1120 = vld [vmem:[%s951 + $0x22] sm:$0xff]
      %v1121 = vld [vmem:[%s951 + $0x32] sm:$0xff]
      %v1122 = vld [vmem:[%s951 + $0x42] sm:$0xff]
      %v1123 = vld [vmem:[%s951 + $0x52] sm:$0xff]
      %v1124 = vld [vmem:[%s951 + $0x62] sm:$0xff]
      %v1125 = vld [vmem:[%s951 + $0x72] sm:$0xff]
      %v1126 = vlaneseq
      %v1127 = vshrl.u32 %v1126, 7
      %v1128 = vsub.s32 5, %v1127
      %v1129 = vrot.slane %v976, %v1128
      %v1130 = vmul.f32 %v1118, %v1129
      %v1131 = vmul.f32 %v1119, %v1129
      %v1132 = vmul.f32 %v1120, %v1129
      %v1133 = vmul.f32 %v1121, %v1129
      %v1134 = vmul.f32 %v1122, %v1129
      %v1135 = vmul.f32 %v1123, %v1129
      %v1136 = vmul.f32 %v1124, %v1129
      %v1137 = vmul.f32 %v1125, %v1129
      %v1138 = vadd.f32 %v1110, %v1130
      %v1139 = vadd.f32 %v1111, %v1131
      %v1140 = vadd.f32 %v1112, %v1132
      %v1141 = vadd.f32 %v1113, %v1133
      %v1142 = vadd.f32 %v1114, %v1134
      %v1143 = vadd.f32 %v1115, %v1135
      %v1144 = vadd.f32 %v1116, %v1136
      %v1145 = vadd.f32 %v1117, %v1137
      %s1146 = scalar_lea.vmem [#allocation2], 32
      %v1147 = vld [vmem:[%s1146] sm:$0xff]
      %v1148 = vld [vmem:[%s1146 + $0x10] sm:$0xff]
      %v1149 = vld [vmem:[%s1146 + $0x20] sm:$0xff]
      %v1150 = vld [vmem:[%s1146 + $0x30] sm:$0xff]
      %v1151 = vld [vmem:[%s1146 + $0x40] sm:$0xff]
      %v1152 = vld [vmem:[%s1146 + $0x50] sm:$0xff]
      %v1153 = vld [vmem:[%s1146 + $0x60] sm:$0xff]
      %v1154 = vld [vmem:[%s1146 + $0x70] sm:$0xff]
      %v1155 = vlaneseq
      %v1156 = vshrl.u32 %v1155, 7
      %v1157 = vsub.s32 6, %v1156
      %v1158 = vrot.slane %v976, %v1157
      %v1159 = vmul.f32 %v1147, %v1158
      %v1160 = vmul.f32 %v1148, %v1158
      %v1161 = vmul.f32 %v1149, %v1158
      %v1162 = vmul.f32 %v1150, %v1158
      %v1163 = vmul.f32 %v1151, %v1158
      %v1164 = vmul.f32 %v1152, %v1158
      %v1165 = vmul.f32 %v1153, %v1158
      %v1166 = vmul.f32 %v1154, %v1158
      %v1167 = vadd.f32 %v1138, %v1159
      %v1168 = vadd.f32 %v1139, %v1160
      %v1169 = vadd.f32 %v1140, %v1161
      %v1170 = vadd.f32 %v1141, %v1162
      %v1171 = vadd.f32 %v1142, %v1163
      %v1172 = vadd.f32 %v1143, %v1164
      %v1173 = vadd.f32 %v1144, %v1165
      %v1174 = vadd.f32 %v1145, %v1166
      %v1175 = vld [vmem:[%s1146 + $0x1] sm:$0xff]
      %v1176 = vld [vmem:[%s1146 + $0x11] sm:$0xff]
      %v1177 = vld [vmem:[%s1146 + $0x21] sm:$0xff]
      %v1178 = vld [vmem:[%s1146 + $0x31] sm:$0xff]
      %v1179 = vld [vmem:[%s1146 + $0x41] sm:$0xff]
      %v1180 = vld [vmem:[%s1146 + $0x51] sm:$0xff]
      %v1181 = vld [vmem:[%s1146 + $0x61] sm:$0xff]
      %v1182 = vld [vmem:[%s1146 + $0x71] sm:$0xff]
      %v1183 = vlaneseq
      %v1184 = vshrl.u32 %v1183, 7
      %v1185 = vsub.s32 7, %v1184
      %v1186 = vrot.slane %v976, %v1185
      %v1187 = vmul.f32 %v1175, %v1186
      %v1188 = vmul.f32 %v1176, %v1186
      %v1189 = vmul.f32 %v1177, %v1186
      %v1190 = vmul.f32 %v1178, %v1186
      %v1191 = vmul.f32 %v1179, %v1186
      %v1192 = vmul.f32 %v1180, %v1186
      %v1193 = vmul.f32 %v1181, %v1186
      %v1194 = vmul.f32 %v1182, %v1186
      %v1195 = vadd.f32 %v1167, %v1187
      %v1196 = vadd.f32 %v1168, %v1188
      %v1197 = vadd.f32 %v1169, %v1189
      %v1198 = vadd.f32 %v1170, %v1190
      %v1199 = vadd.f32 %v1171, %v1191
      %v1200 = vadd.f32 %v1172, %v1192
      %v1201 = vadd.f32 %v1173, %v1193
      %v1202 = vadd.f32 %v1174, %v1194
      %v1203 = vld [vmem:[%s1146 + $0x2] sm:$0xff]
      %v1204 = vld [vmem:[%s1146 + $0x12] sm:$0xff]
      %v1205 = vld [vmem:[%s1146 + $0x22] sm:$0xff]
      %v1206 = vld [vmem:[%s1146 + $0x32] sm:$0xff]
      %v1207 = vld [vmem:[%s1146 + $0x42] sm:$0xff]
      %v1208 = vld [vmem:[%s1146 + $0x52] sm:$0xff]
      %v1209 = vld [vmem:[%s1146 + $0x62] sm:$0xff]
      %v1210 = vld [vmem:[%s1146 + $0x72] sm:$0xff]
      %v1211 = vlaneseq
      %v1212 = vshrl.u32 %v1211, 7
      %v1213 = vsub.s32 0, %v1212
      %v1214 = vrot.slane %v977, %v1213
      %v1215 = vmul.f32 %v1203, %v1214
      %v1216 = vmul.f32 %v1204, %v1214
      %v1217 = vmul.f32 %v1205, %v1214
      %v1218 = vmul.f32 %v1206, %v1214
      %v1219 = vmul.f32 %v1207, %v1214
      %v1220 = vmul.f32 %v1208, %v1214
      %v1221 = vmul.f32 %v1209, %v1214
      %v1222 = vmul.f32 %v1210, %v1214
      %v1223 = vadd.f32 %v1195, %v1215
      %v1224 = vadd.f32 %v1196, %v1216
      %v1225 = vadd.f32 %v1197, %v1217
      %v1226 = vadd.f32 %v1198, %v1218
      %v1227 = vadd.f32 %v1199, %v1219
      %v1228 = vadd.f32 %v1200, %v1220
      %v1229 = vadd.f32 %v1201, %v1221
      %v1230 = vadd.f32 %v1202, %v1222
      %v1231 = vld [vmem:[%s6] sm:$0x1]
      %v1233 = vlaneseq
      %v1234 = vshrl.u32 %v1233, 7
      %v1235 = vsub.s32 0, %v1234
      %v1236 = vrot.slane %v1231, %v1235
      %v1238 = vadd.f32 %v1223, %v1236
      %v1239 = vadd.f32 %v1224, %v1236
      %v1240 = vadd.f32 %v1225, %v1236
      %v1241 = vadd.f32 %v1226, %v1236
      %v1242 = vadd.f32 %v1227, %v1236
      %v1243 = vadd.f32 %v1228, %v1236
      %v1244 = vadd.f32 %v1229, %v1236
      %v1245 = vadd.f32 %v1230, %v1236
      %v1246 = vxor.u32 %v1238, 2147483648
      %v1247 = vxor.u32 %v1239, 2147483648
      %v1248 = vxor.u32 %v1240, 2147483648
      %v1249 = vxor.u32 %v1241, 2147483648
      %v1250 = vxor.u32 %v1242, 2147483648
      %v1251 = vxor.u32 %v1243, 2147483648
      %v1252 = vxor.u32 %v1244, 2147483648
      %v1253 = vxor.u32 %v1245, 2147483648
      %v1254 = vmul.f32 %v1246, 1.442695
      %v1255 = vpow.pop %v1254
      %v1256 = vmul.f32 %v1247, 1.442695
      %v1257 = vpow.pop %v1256
      %v1258 = vmul.f32 %v1248, 1.442695
      %v1259 = vpow.pop %v1258
      %v1260 = vmul.f32 %v1249, 1.442695
      %v1261 = vpow.pop %v1260
      %v1262 = vmul.f32 %v1250, 1.442695
      %v1263 = vpow.pop %v1262
      %v1264 = vmul.f32 %v1251, 1.442695
      %v1265 = vpow.pop %v1264
      %v1266 = vmul.f32 %v1252, 1.442695
      %v1267 = vpow.pop %v1266
      %v1268 = vmul.f32 %v1253, 1.442695
      %v1269 = vpow.pop %v1268
      %v1270 = vadd.f32 %v1255, 1.0
      %v1271 = vadd.f32 %v1257, 1.0
      %v1272 = vadd.f32 %v1259, 1.0
      %v1273 = vadd.f32 %v1261, 1.0
      %v1274 = vadd.f32 %v1263, 1.0
      %v1275 = vadd.f32 %v1265, 1.0
      %v1276 = vadd.f32 %v1267, 1.0
      %v1277 = vadd.f32 %v1269, 1.0
      %v1278 = vrcp.pop %v1270
      %v1279 = vmul.f32 1.0, %v1278
      %v1280 = vrcp.pop %v1271
      %v1281 = vmul.f32 1.0, %v1280
      %v1282 = vrcp.pop %v1272
      %v1283 = vmul.f32 1.0, %v1282
      %v1284 = vrcp.pop %v1273
      %v1285 = vmul.f32 1.0, %v1284
      %v1286 = vrcp.pop %v1274
      %v1287 = vmul.f32 1.0, %v1286
      %v1288 = vrcp.pop %v1275
      %v1289 = vmul.f32 1.0, %v1288
      %v1290 = vrcp.pop %v1276
      %v1291 = vmul.f32 1.0, %v1290
      %v1292 = vrcp.pop %v1277
      %v1293 = vmul.f32 1.0, %v1292
      %v1294 = vmul.f32 %v1238, %v1279
      %v1295 = vmul.f32 %v1239, %v1281
      %v1296 = vmul.f32 %v1240, %v1283
      %v1297 = vmul.f32 %v1241, %v1285
      %v1298 = vmul.f32 %v1242, %v1287
      %v1299 = vmul.f32 %v1243, %v1289
      %v1300 = vmul.f32 %v1244, %v1291
      %v1301 = vmul.f32 %v1245, %v1293
      %v1302 = vadd.f32 %v1294, %v1295
      %v1303 = vadd.f32 %v1302, %v1296
      %v1304 = vadd.f32 %v1303, %v1297
      %v1305 = vadd.f32 %v1304, %v1298
      %v1306 = vadd.f32 %v1305, %v1299
      %v1307 = vadd.f32 %v1306, %v1300
      %v1308 = vadd.f32 %v1307, %v1301
      %v1309 = vrot.slane %v1308, 4
      %v1310 = vadd.f32 %v1308, %v1309
      %v1311 = vrot.slane %v1310, 2
      %v1312 = vadd.f32 %v1310, %v1311
      %v1313 = vrot.slane %v1312, 1
      %v1314 = vadd.f32 %v1312, %v1313
      %v1315 = vrcp.pop 64.0
      %v1316 = vmul.f32 %v1314, %v1315
      %v1317 = vpack.c.bf16 %v1316, %v1316
      %v1318 = vld [vmem:[%s7] sm:$0xf]
      %v1319 = vld [vmem:[%s7 + $0x4] sm:$0xf]
      %v1320 = vld [vmem:[%s7 + $0x8] sm:$0xf]
      %v1321 = vld [vmem:[%s7 + $0xc] sm:$0xf]
      %v1322 = vld [vmem:[%s7 + $0x10] sm:$0xf]
      %v1323 = vld [vmem:[%s7 + $0x14] sm:$0xf]
      %v1324 = vld [vmem:[%s7 + $0x18] sm:$0xf]
      %v1325 = vld [vmem:[%s7 + $0x1c] sm:$0xf]
      %v1326 = vld [vmem:[%s7 + $0x20] sm:$0xf]
      %v1327 = vld [vmem:[%s7 + $0x24] sm:$0xf]
      %v1328 = vld [vmem:[%s7 + $0x28] sm:$0xf]
      %v1329 = vld [vmem:[%s7 + $0x2c] sm:$0xf]
      %v1330 = vld [vmem:[%s7 + $0x30] sm:$0xf]
      %v1331 = vld [vmem:[%s7 + $0x34] sm:$0xf]
      %v1332 = vld [vmem:[%s7 + $0x38] sm:$0xf]
      %v1333 = vld [vmem:[%s7 + $0x3c] sm:$0xf]
      %v1334 = vld [vmem:[%s8] sm:$0x1]
      %v1351 = vunpack.c.l.b16 %v1318
      %v1352 = vunpack.c.l.b16 %v1319
      %v1353 = vunpack.c.l.b16 %v1320
      %v1354 = vunpack.c.l.b16 %v1321
      %v1355 = vunpack.c.l.b16 %v1322
      %v1356 = vunpack.c.l.b16 %v1323
      %v1357 = vunpack.c.l.b16 %v1324
      %v1358 = vunpack.c.l.b16 %v1325
      %v1359 = vunpack.c.l.b16 %v1326
      %v1360 = vunpack.c.l.b16 %v1327
      %v1361 = vunpack.c.l.b16 %v1328
      %v1362 = vunpack.c.l.b16 %v1329
      %v1363 = vunpack.c.l.b16 %v1330
      %v1364 = vunpack.c.l.b16 %v1331
      %v1365 = vunpack.c.l.b16 %v1332
      %v1366 = vunpack.c.l.b16 %v1333
      %v1367 = vpack.c.b16 %v1352, %v1351
      %v1368 = vpack.c.b16 %v1354, %v1353
      %v1369 = vpack.c.b16 %v1356, %v1355
      %v1370 = vpack.c.b16 %v1358, %v1357
      %v1371 = vpack.c.b16 %v1360, %v1359
      %v1372 = vpack.c.b16 %v1362, %v1361
      %v1373 = vpack.c.b16 %v1364, %v1363
      %v1374 = vpack.c.b16 %v1366, %v1365
      %1383 = vmatprep.subr.bf16.mxu0 0
      %1384 = vmatpush1.bf16.msra.mxu0 %v1367
      %1385 = vmatprep.subr.bf16.mxu0 0
      %1386 = vmatpush1.bf16.msra.mxu0 %v1368
      %1387 = vmatprep.subr.bf16.mxu0 0
      %1388 = vmatpush1.bf16.msra.mxu0 %v1369
      %1389 = vmatprep.subr.bf16.mxu0 0
      %1390 = vmatpush1.bf16.msra.mxu0 %v1370
      %1391 = vmatprep.subr.bf16.mxu0 0
      %1392 = vmatpush1.bf16.msra.mxu0 %v1371
      %1393 = vmatprep.subr.bf16.mxu0 0
      %1394 = vmatpush1.bf16.msra.mxu0 %v1372
      %1395 = vmatprep.subr.bf16.mxu0 0
      %1396 = vmatpush1.bf16.msra.mxu0 %v1373
      %1397 = vmatprep.subr.bf16.mxu0 0
      %1398 = vmatpush1.bf16.msra.mxu0 %v1374
      %1399 = vmatprep.subr.bf16.mxu0 0
      %1400 = vmatpush1.bf16.msra.mxu0 0
      %1401 = vmatprep.subr.bf16.mxu0 0
      %1402 = vmatpush1.bf16.msra.mxu0 0
      %1403 = vmatprep.subr.bf16.mxu0 0
      %1404 = vmatpush1.bf16.msra.mxu0 0
      %1405 = vmatprep.subr.bf16.mxu0 0
      %1406 = vmatpush1.bf16.msra.mxu0 0
      %1407 = vmatprep.subr.bf16.mxu0 0
      %1408 = vmatpush1.bf16.msra.mxu0 0
      %1409 = vmatprep.subr.bf16.mxu0 0
      %1410 = vmatpush1.bf16.msra.mxu0 0
      %1411 = vmatprep.subr.bf16.mxu0 0
      %1412 = vmatpush1.bf16.msra.mxu0 0
      %1413 = vmatprep.subr.bf16.mxu0 0
      %1414 = vmatpush1.bf16.msra.mxu0 0
      %1415 = vmatprep.mubr.bf16.mxu0 0
      %1416 = vmatmul.mubr.bf16.gmra.mrb[0].mxu0 %v1317
      %v1417 = vpop.f32.mrb[0].mxu0
      %v1418 = vadd.f32 %v1334, %v1417
      %v1419 = vpop.f32.mrb[0].mxu0
      %v1420 = vpop.f32.mrb[0].mxu0
      %v1421 = vpop.f32.mrb[0].mxu0
      %1422 = vdwg.mxu0
      %v1423 = vxor.u32 %v1418, 2147483648
      %v1424 = vmul.f32 %v1423, 1.442695
      %v1425 = vpow.pop %v1424
      %v1426 = vadd.f32 %v1425, 1.0
      %v1427 = vrcp.pop %v1426
      %v1428 = vmul.f32 1.0, %v1427
      %v1429 = vmul.f32 %v1418, %v1428
      %v1430 = vpack.c.bf16 %v1429, %v1429
      %v1431 = vld [vmem:[%s9] sm:$0xf]
      %v1432 = vld [vmem:[%s9 + $0x4] sm:$0xf]
      %v1433 = vld [vmem:[%s9 + $0x8] sm:$0xf]
      %v1434 = vld [vmem:[%s9 + $0xc] sm:$0xf]
      %v1435 = vld [vmem:[%s9 + $0x10] sm:$0xf]
      %v1436 = vld [vmem:[%s9 + $0x14] sm:$0xf]
      %v1437 = vld [vmem:[%s9 + $0x18] sm:$0xf]
      %v1438 = vld [vmem:[%s9 + $0x1c] sm:$0xf]
      %v1439 = vld [vmem:[%s9 + $0x20] sm:$0xf]
      %v1440 = vld [vmem:[%s9 + $0x24] sm:$0xf]
      %v1441 = vld [vmem:[%s9 + $0x28] sm:$0xf]
      %v1442 = vld [vmem:[%s9 + $0x2c] sm:$0xf]
      %v1443 = vld [vmem:[%s9 + $0x30] sm:$0xf]
      %v1444 = vld [vmem:[%s9 + $0x34] sm:$0xf]
      %v1445 = vld [vmem:[%s9 + $0x38] sm:$0xf]
      %v1446 = vld [vmem:[%s9 + $0x3c] sm:$0xf]
      %v1447 = vld [vmem:[%s10] sm:$0x1]
      %v1464 = vunpack.c.l.b16 %v1431
      %v1465 = vunpack.c.l.b16 %v1432
      %v1466 = vunpack.c.l.b16 %v1433
      %v1467 = vunpack.c.l.b16 %v1434
      %v1468 = vunpack.c.l.b16 %v1435
      %v1469 = vunpack.c.l.b16 %v1436
      %v1470 = vunpack.c.l.b16 %v1437
      %v1471 = vunpack.c.l.b16 %v1438
      %v1472 = vunpack.c.l.b16 %v1439
      %v1473 = vunpack.c.l.b16 %v1440
      %v1474 = vunpack.c.l.b16 %v1441
      %v1475 = vunpack.c.l.b16 %v1442
      %v1476 = vunpack.c.l.b16 %v1443
      %v1477 = vunpack.c.l.b16 %v1444
      %v1478 = vunpack.c.l.b16 %v1445
      %v1479 = vunpack.c.l.b16 %v1446
      %v1480 = vpack.c.b16 %v1465, %v1464
      %v1481 = vpack.c.b16 %v1467, %v1466
      %v1482 = vpack.c.b16 %v1469, %v1468
      %v1483 = vpack.c.b16 %v1471, %v1470
      %v1484 = vpack.c.b16 %v1473, %v1472
      %v1485 = vpack.c.b16 %v1475, %v1474
      %v1486 = vpack.c.b16 %v1477, %v1476
      %v1487 = vpack.c.b16 %v1479, %v1478
      %1496 = vmatprep.subr.bf16.mxu0 0
      %1497 = vmatpush1.bf16.msra.mxu0 %v1480
      %1498 = vmatprep.subr.bf16.mxu0 0
      %1499 = vmatpush1.bf16.msra.mxu0 %v1481
      %1500 = vmatprep.subr.bf16.mxu0 0
      %1501 = vmatpush1.bf16.msra.mxu0 %v1482
      %1502 = vmatprep.subr.bf16.mxu0 0
      %1503 = vmatpush1.bf16.msra.mxu0 %v1483
      %1504 = vmatprep.subr.bf16.mxu0 0
      %1505 = vmatpush1.bf16.msra.mxu0 %v1484
      %1506 = vmatprep.subr.bf16.mxu0 0
      %1507 = vmatpush1.bf16.msra.mxu0 %v1485
      %1508 = vmatprep.subr.bf16.mxu0 0
      %1509 = vmatpush1.bf16.msra.mxu0 %v1486
      %1510 = vmatprep.subr.bf16.mxu0 0
      %1511 = vmatpush1.bf16.msra.mxu0 %v1487
      %1512 = vmatprep.subr.bf16.mxu0 0
      %1513 = vmatpush1.bf16.msra.mxu0 0
      %1514 = vmatprep.subr.bf16.mxu0 0
      %1515 = vmatpush1.bf16.msra.mxu0 0
      %1516 = vmatprep.subr.bf16.mxu0 0
      %1517 = vmatpush1.bf16.msra.mxu0 0
      %1518 = vmatprep.subr.bf16.mxu0 0
      %1519 = vmatpush1.bf16.msra.mxu0 0
      %1520 = vmatprep.subr.bf16.mxu0 0
      %1521 = vmatpush1.bf16.msra.mxu0 0
      %1522 = vmatprep.subr.bf16.mxu0 0
      %1523 = vmatpush1.bf16.msra.mxu0 0
      %1524 = vmatprep.subr.bf16.mxu0 0
      %1525 = vmatpush1.bf16.msra.mxu0 0
      %1526 = vmatprep.subr.bf16.mxu0 0
      %1527 = vmatpush1.bf16.msra.mxu0 0
      %1528 = vmatprep.mubr.bf16.mxu0 0
      %1529 = vmatmul.mubr.bf16.gmra.mrb[0].mxu0 %v1430
      %v1530 = vpop.f32.mrb[0].mxu0
      %v1531 = vadd.f32 %v1447, %v1530
      %v1532 = vpop.f32.mrb[0].mxu0
      %v1533 = vpop.f32.mrb[0].mxu0
      %v1534 = vpop.f32.mrb[0].mxu0
      %1535 = vdwg.mxu0
      %v1536 = vxor.u32 %v1531, 2147483648
      %v1537 = vmul.f32 %v1536, 1.442695
      %v1538 = vpow.pop %v1537
      %v1539 = vadd.f32 %v1538, 1.0
      %v1540 = vrcp.pop %v1539
      %v1541 = vmul.f32 1.0, %v1540
      %v1542 = vlaneseq
      %v1543 = vshrl.u32 %v1542, 7
      %v1544 = vsub.s32 0, %v1543
      %v1545 = vrot.slane %v1541, %v1544
      %v1546 = vmul.f32 %v1294, %v1545
      %v1547 = vmul.f32 %v1295, %v1545
      %v1548 = vmul.f32 %v1296, %v1545
      %v1549 = vmul.f32 %v1297, %v1545
      %v1550 = vmul.f32 %v1298, %v1545
      %v1551 = vmul.f32 %v1299, %v1545
      %v1552 = vmul.f32 %v1300, %v1545
      %v1553 = vmul.f32 %v1301, %v1545
      %v1554 = vpack.c.bf16 %v1547, %v1546
      %v1555 = vpack.c.bf16 %v1549, %v1548
      %v1556 = vpack.c.bf16 %v1551, %v1550
      %v1557 = vpack.c.bf16 %v1553, %v1552
      %v1558 = vld [vmem:[%s11] sm:$0xf]
      %v1559 = vld [vmem:[%s11 + $0x4] sm:$0xf]
      %v1560 = vld [vmem:[%s11 + $0x8] sm:$0xf]
      %v1561 = vld [vmem:[%s11 + $0xc] sm:$0xf]
      %v1562 = vld [vmem:[%s11 + $0x10] sm:$0xf]
      %v1563 = vld [vmem:[%s11 + $0x14] sm:$0xf]
      %v1564 = vld [vmem:[%s11 + $0x18] sm:$0xf]
      %v1565 = vld [vmem:[%s11 + $0x1c] sm:$0xf]
      %v1566 = vld [vmem:[%s11 + $0x20] sm:$0xf]
      %v1567 = vld [vmem:[%s11 + $0x24] sm:$0xf]
      %v1568 = vld [vmem:[%s11 + $0x28] sm:$0xf]
      %v1569 = vld [vmem:[%s11 + $0x2c] sm:$0xf]
      %v1570 = vld [vmem:[%s11 + $0x30] sm:$0xf]
      %v1571 = vld [vmem:[%s11 + $0x34] sm:$0xf]
      %v1572 = vld [vmem:[%s11 + $0x38] sm:$0xf]
      %v1573 = vld [vmem:[%s11 + $0x3c] sm:$0xf]
      %v1574 = vld [vmem:[%s12] sm:$0x1]
      %v1576 = vlaneseq
      %v1577 = vshrl.u32 %v1576, 7
      %v1578 = vsub.s32 0, %v1577
      %v1579 = vrot.slane %v1574, %v1578
      %v1597 = vunpack.c.l.b16 %v1558
      %v1598 = vunpack.c.l.b16 %v1559
      %v1599 = vunpack.c.l.b16 %v1560
      %v1600 = vunpack.c.l.b16 %v1561
      %v1601 = vunpack.c.l.b16 %v1562
      %v1602 = vunpack.c.l.b16 %v1563
      %v1603 = vunpack.c.l.b16 %v1564
      %v1604 = vunpack.c.l.b16 %v1565
      %v1605 = vunpack.c.l.b16 %v1566
      %v1606 = vunpack.c.l.b16 %v1567
      %v1607 = vunpack.c.l.b16 %v1568
      %v1608 = vunpack.c.l.b16 %v1569
      %v1609 = vunpack.c.l.b16 %v1570
      %v1610 = vunpack.c.l.b16 %v1571
      %v1611 = vunpack.c.l.b16 %v1572
      %v1612 = vunpack.c.l.b16 %v1573
      %v1613 = vpack.c.b16 %v1598, %v1597
      %v1614 = vpack.c.b16 %v1600, %v1599
      %v1615 = vpack.c.b16 %v1602, %v1601
      %v1616 = vpack.c.b16 %v1604, %v1603
      %v1617 = vpack.c.b16 %v1606, %v1605
      %v1618 = vpack.c.b16 %v1608, %v1607
      %v1619 = vpack.c.b16 %v1610, %v1609
      %v1620 = vpack.c.b16 %v1612, %v1611
      %1629 = vmatprep.subr.bf16.mxu0 0
      %1630 = vmatpush1.bf16.msra.mxu0 %v1613
      %1631 = vmatprep.subr.bf16.mxu0 0
      %1632 = vmatpush1.bf16.msra.mxu0 %v1614
      %1633 = vmatprep.subr.bf16.mxu0 0
      %1634 = vmatpush1.bf16.msra.mxu0 %v1615
      %1635 = vmatprep.subr.bf16.mxu0 0
      %1636 = vmatpush1.bf16.msra.mxu0 %v1616
      %1637 = vmatprep.subr.bf16.mxu0 0
      %1638 = vmatpush1.bf16.msra.mxu0 %v1617
      %1639 = vmatprep.subr.bf16.mxu0 0
      %1640 = vmatpush1.bf16.msra.mxu0 %v1618
      %1641 = vmatprep.subr.bf16.mxu0 0
      %1642 = vmatpush1.bf16.msra.mxu0 %v1619
      %1643 = vmatprep.subr.bf16.mxu0 0
      %1644 = vmatpush1.bf16.msra.mxu0 %v1620
      %1645 = vmatprep.subr.bf16.mxu0 0
      %1646 = vmatpush1.bf16.msra.mxu0 0
      %1647 = vmatprep.subr.bf16.mxu0 0
      %1648 = vmatpush1.bf16.msra.mxu0 0
      %1649 = vmatprep.subr.bf16.mxu0 0
      %1650 = vmatpush1.bf16.msra.mxu0 0
      %1651 = vmatprep.subr.bf16.mxu0 0
      %1652 = vmatpush1.bf16.msra.mxu0 0
      %1653 = vmatprep.subr.bf16.mxu0 0
      %1654 = vmatpush1.bf16.msra.mxu0 0
      %1655 = vmatprep.subr.bf16.mxu0 0
      %1656 = vmatpush1.bf16.msra.mxu0 0
      %1657 = vmatprep.subr.bf16.mxu0 0
      %1658 = vmatpush1.bf16.msra.mxu0 0
      %1659 = vmatprep.subr.bf16.mxu0 0
      %1660 = vmatpush1.bf16.msra.mxu0 0
      %1661 = vmatprep.mubr.bf16.mxu0 0
      %1662 = vmatmul.mubr.bf16.gmra.mrb[0].mxu0 %v1554
      %v1663 = vpop.f32.mrb[0].mxu0
      %v1664 = vadd.f32 %v1579, %v1663
      %v1665 = vpop.f32.mrb[0].mxu0
      %v1666 = vpop.f32.mrb[0].mxu0
      %v1667 = vadd.f32 %v1579, %v1666
      %v1668 = vpop.f32.mrb[0].mxu0
      %1669 = vmatprep.mubr.bf16.mxu0 0
      %1670 = vmatmul.mubr.bf16.gmra.mrb[0].mxu0 %v1555
      %v1671 = vpop.f32.mrb[0].mxu0
      %v1672 = vadd.f32 %v1579, %v1671
      %v1673 = vpop.f32.mrb[0].mxu0
      %v1674 = vpop.f32.mrb[0].mxu0
      %v1675 = vadd.f32 %v1579, %v1674
      %v1676 = vpop.f32.mrb[0].mxu0
      %1677 = vmatprep.mubr.bf16.mxu0 0
      %1678 = vmatmul.mubr.bf16.gmra.mrb[0].mxu0 %v1556
      %v1679 = vpop.f32.mrb[0].mxu0
      %v1680 = vadd.f32 %v1579, %v1679
      %v1681 = vpop.f32.mrb[0].mxu0
      %v1682 = vpop.f32.mrb[0].mxu0
      %v1683 = vadd.f32 %v1579, %v1682
      %v1684 = vpop.f32.mrb[0].mxu0
      %1685 = vmatprep.mubr.bf16.mxu0 0
      %1686 = vmatmul.mubr.bf16.gmra.mrb[0].mxu0 %v1557
      %v1687 = vpop.f32.mrb[0].mxu0
      %v1688 = vadd.f32 %v1579, %v1687
      %v1689 = vpop.f32.mrb[0].mxu0
      %v1690 = vpop.f32.mrb[0].mxu0
      %v1691 = vadd.f32 %v1579, %v1690
      %v1692 = vpop.f32.mrb[0].mxu0
      %1693 = vdwg.mxu0
      %v1694 = vpack.c.bf16 %v1667, %v1664
      %v1695 = vpack.c.bf16 %v1675, %v1672
      %v1696 = vpack.c.bf16 %v1683, %v1680
      %v1697 = vpack.c.bf16 %v1691, %v1688
      %v1698 = vld [vmem:[%s13] sm:$0xf]
      %v1699 = vld [vmem:[%s13 + $0x4] sm:$0xf]
      %v1700 = vld [vmem:[%s13 + $0x8] sm:$0xf]
      %v1701 = vld [vmem:[%s13 + $0xc] sm:$0xf]
      %v1702 = vld [vmem:[%s13 + $0x10] sm:$0xf]
      %v1703 = vld [vmem:[%s13 + $0x14] sm:$0xf]
      %v1704 = vld [vmem:[%s13 + $0x18] sm:$0xf]
      %v1705 = vld [vmem:[%s13 + $0x1c] sm:$0xf]
      %v1706 = vld [vmem:[%s13 + $0x20] sm:$0xf]
      %v1707 = vld [vmem:[%s13 + $0x24] sm:$0xf]
      %v1708 = vld [vmem:[%s13 + $0x28] sm:$0xf]
      %v1709 = vld [vmem:[%s13 + $0x2c] sm:$0xf]
      %v1710 = vld [vmem:[%s13 + $0x30] sm:$0xf]
      %v1711 = vld [vmem:[%s13 + $0x34] sm:$0xf]
      %v1712 = vld [vmem:[%s13 + $0x38] sm:$0xf]
      %v1713 = vld [vmem:[%s13 + $0x3c] sm:$0xf]
      %v1714 = vld [vmem:[%s14] sm:$0x1]
      %v1716 = vlaneseq
      %v1717 = vshrl.u32 %v1716, 7
      %v1718 = vsub.s32 0, %v1717
      %v1719 = vrot.slane %v1714, %v1718
      %v1737 = vunpack.c.l.b16 %v1698
      %v1738 = vunpack.c.l.b16 %v1699
      %v1739 = vunpack.c.l.b16 %v1700
      %v1740 = vunpack.c.l.b16 %v1701
      %v1741 = vunpack.c.l.b16 %v1702
      %v1742 = vunpack.c.l.b16 %v1703
      %v1743 = vunpack.c.l.b16 %v1704
      %v1744 = vunpack.c.l.b16 %v1705
      %v1745 = vunpack.c.l.b16 %v1706
      %v1746 = vunpack.c.l.b16 %v1707
      %v1747 = vunpack.c.l.b16 %v1708
      %v1748 = vunpack.c.l.b16 %v1709
      %v1749 = vunpack.c.l.b16 %v1710
      %v1750 = vunpack.c.l.b16 %v1711
      %v1751 = vunpack.c.l.b16 %v1712
      %v1752 = vunpack.c.l.b16 %v1713
      %v1753 = vpack.c.b16 %v1738, %v1737
      %v1754 = vpack.c.b16 %v1740, %v1739
      %v1755 = vpack.c.b16 %v1742, %v1741
      %v1756 = vpack.c.b16 %v1744, %v1743
      %v1757 = vpack.c.b16 %v1746, %v1745
      %v1758 = vpack.c.b16 %v1748, %v1747
      %v1759 = vpack.c.b16 %v1750, %v1749
      %v1760 = vpack.c.b16 %v1752, %v1751
      %1769 = vmatprep.subr.bf16.mxu0 0
      %1770 = vmatpush1.bf16.msra.mxu0 %v1753
      %1771 = vmatprep.subr.bf16.mxu0 0
      %1772 = vmatpush1.bf16.msra.mxu0 %v1754
      %1773 = vmatprep.subr.bf16.mxu0 0
      %1774 = vmatpush1.bf16.msra.mxu0 %v1755
      %1775 = vmatprep.subr.bf16.mxu0 0
      %1776 = vmatpush1.bf16.msra.mxu0 %v1756
      %1777 = vmatprep.subr.bf16.mxu0 0
      %1778 = vmatpush1.bf16.msra.mxu0 %v1757
      %1779 = vmatprep.subr.bf16.mxu0 0
      %1780 = vmatpush1.bf16.msra.mxu0 %v1758
      %1781 = vmatprep.subr.bf16.mxu0 0
      %1782 = vmatpush1.bf16.msra.mxu0 %v1759
      %1783 = vmatprep.subr.bf16.mxu0 0
      %1784 = vmatpush1.bf16.msra.mxu0 %v1760
      %1785 = vmatprep.subr.bf16.mxu0 0
      %1786 = vmatpush1.bf16.msra.mxu0 0
      %1787 = vmatprep.subr.bf16.mxu0 0
      %1788 = vmatpush1.bf16.msra.mxu0 0
      %1789 = vmatprep.subr.bf16.mxu0 0
      %1790 = vmatpush1.bf16.msra.mxu0 0
      %1791 = vmatprep.subr.bf16.mxu0 0
      %1792 = vmatpush1.bf16.msra.mxu0 0
      %1793 = vmatprep.subr.bf16.mxu0 0
      %1794 = vmatpush1.bf16.msra.mxu0 0
      %1795 = vmatprep.subr.bf16.mxu0 0
      %1796 = vmatpush1.bf16.msra.mxu0 0
      %1797 = vmatprep.subr.bf16.mxu0 0
      %1798 = vmatpush1.bf16.msra.mxu0 0
      %1799 = vmatprep.subr.bf16.mxu0 0
      %1800 = vmatpush1.bf16.msra.mxu0 0
      %1801 = vmatprep.mubr.bf16.mxu0 0
      %1802 = vmatmul.mubr.bf16.gmra.mrb[0].mxu0 %v1694
      %v1803 = vpop.f32.mrb[0].mxu0
      %v1804 = vadd.f32 %v1719, %v1803
      %v1805 = vpop.f32.mrb[0].mxu0
      %v1806 = vpop.f32.mrb[0].mxu0
      %v1807 = vadd.f32 %v1719, %v1806
      %v1808 = vpop.f32.mrb[0].mxu0
      %1809 = vmatprep.mubr.bf16.mxu0 0
      %1810 = vmatmul.mubr.bf16.gmra.mrb[0].mxu0 %v1695
      %v1811 = vpop.f32.mrb[0].mxu0
      %v1812 = vadd.f32 %v1719, %v1811
      %v1813 = vpop.f32.mrb[0].mxu0
      %v1814 = vpop.f32.mrb[0].mxu0
      %v1815 = vadd.f32 %v1719, %v1814
      %v1816 = vpop.f32.mrb[0].mxu0
      %1817 = vmatprep.mubr.bf16.mxu0 0
      %1818 = vmatmul.mubr.bf16.gmra.mrb[0].mxu0 %v1696
      %v1819 = vpop.f32.mrb[0].mxu0
      %v1820 = vadd.f32 %v1719, %v1819
      %v1821 = vpop.f32.mrb[0].mxu0
      %v1822 = vpop.f32.mrb[0].mxu0
      %v1823 = vadd.f32 %v1719, %v1822
      %v1824 = vpop.f32.mrb[0].mxu0
      %1825 = vmatprep.mubr.bf16.mxu0 0
      %1826 = vmatmul.mubr.bf16.gmra.mrb[0].mxu0 %v1697
      %v1827 = vpop.f32.mrb[0].mxu0
      %v1828 = vadd.f32 %v1719, %v1827
      %v1829 = vpop.f32.mrb[0].mxu0
      %v1830 = vpop.f32.mrb[0].mxu0
      %v1831 = vadd.f32 %v1719, %v1830
      %v1832 = vpop.f32.mrb[0].mxu0
      %1833 = vdwg.mxu0
      %v1834 = vxor.u32 %v1804, 2147483648
      %v1835 = vxor.u32 %v1807, 2147483648
      %v1836 = vxor.u32 %v1812, 2147483648
      %v1837 = vxor.u32 %v1815, 2147483648
      %v1838 = vxor.u32 %v1820, 2147483648
      %v1839 = vxor.u32 %v1823, 2147483648
      %v1840 = vxor.u32 %v1828, 2147483648
      %v1841 = vxor.u32 %v1831, 2147483648
      %v1842 = vmul.f32 %v1834, 1.442695
      %v1843 = vpow.pop %v1842
      %v1844 = vmul.f32 %v1835, 1.442695
      %v1845 = vpow.pop %v1844
      %v1846 = vmul.f32 %v1836, 1.442695
      %v1847 = vpow.pop %v1846
      %v1848 = vmul.f32 %v1837, 1.442695
      %v1849 = vpow.pop %v1848
      %v1850 = vmul.f32 %v1838, 1.442695
      %v1851 = vpow.pop %v1850
      %v1852 = vmul.f32 %v1839, 1.442695
      %v1853 = vpow.pop %v1852
      %v1854 = vmul.f32 %v1840, 1.442695
      %v1855 = vpow.pop %v1854
      %v1856 = vmul.f32 %v1841, 1.442695
      %v1857 = vpow.pop %v1856
      %v1858 = vadd.f32 %v1843, 1.0
      %v1859 = vadd.f32 %v1845, 1.0
      %v1860 = vadd.f32 %v1847, 1.0
      %v1861 = vadd.f32 %v1849, 1.0
      %v1862 = vadd.f32 %v1851, 1.0
      %v1863 = vadd.f32 %v1853, 1.0
      %v1864 = vadd.f32 %v1855, 1.0
      %v1865 = vadd.f32 %v1857, 1.0
      %v1866 = vrcp.pop %v1858
      %v1867 = vmul.f32 1.0, %v1866
      %v1868 = vrcp.pop %v1859
      %v1869 = vmul.f32 1.0, %v1868
      %v1870 = vrcp.pop %v1860
      %v1871 = vmul.f32 1.0, %v1870
      %v1872 = vrcp.pop %v1861
      %v1873 = vmul.f32 1.0, %v1872
      %v1874 = vrcp.pop %v1862
      %v1875 = vmul.f32 1.0, %v1874
      %v1876 = vrcp.pop %v1863
      %v1877 = vmul.f32 1.0, %v1876
      %v1878 = vrcp.pop %v1864
      %v1879 = vmul.f32 1.0, %v1878
      %v1880 = vrcp.pop %v1865
      %v1881 = vmul.f32 1.0, %v1880
      %v1882 = vmul.f32 %v1804, %v1867
      %v1883 = vmul.f32 %v1807, %v1869
      %v1884 = vmul.f32 %v1812, %v1871
      %v1885 = vmul.f32 %v1815, %v1873
      %v1886 = vmul.f32 %v1820, %v1875
      %v1887 = vmul.f32 %v1823, %v1877
      %v1888 = vmul.f32 %v1828, %v1879
      %v1889 = vmul.f32 %v1831, %v1881
      %v1890 = vadd.f32 %v1882, %v1883
      %v1891 = vadd.f32 %v1890, %v1884
      %v1892 = vadd.f32 %v1891, %v1885
      %v1893 = vadd.f32 %v1892, %v1886
      %v1894 = vadd.f32 %v1893, %v1887
      %v1895 = vadd.f32 %v1894, %v1888
      %v1896 = vadd.f32 %v1895, %v1889
      %v1897 = vrot.slane %v1896, 4
      %v1898 = vadd.f32 %v1896, %v1897
      %v1899 = vrot.slane %v1898, 2
      %v1900 = vadd.f32 %v1898, %v1899
      %v1901 = vrot.slane %v1900, 1
      %v1902 = vadd.f32 %v1900, %v1901
      %v1903 = vmul.f32 %v1902, %v1315
      %v1904 = vpack.c.bf16 %v1903, %v1903
      %v1905 = vld [vmem:[%s15] sm:$0xf]
      %v1906 = vld [vmem:[%s15 + $0x4] sm:$0xf]
      %v1907 = vld [vmem:[%s15 + $0x8] sm:$0xf]
      %v1908 = vld [vmem:[%s15 + $0xc] sm:$0xf]
      %v1909 = vld [vmem:[%s15 + $0x10] sm:$0xf]
      %v1910 = vld [vmem:[%s15 + $0x14] sm:$0xf]
      %v1911 = vld [vmem:[%s15 + $0x18] sm:$0xf]
      %v1912 = vld [vmem:[%s15 + $0x1c] sm:$0xf]
      %v1913 = vld [vmem:[%s15 + $0x20] sm:$0xf]
      %v1914 = vld [vmem:[%s15 + $0x24] sm:$0xf]
      %v1915 = vld [vmem:[%s15 + $0x28] sm:$0xf]
      %v1916 = vld [vmem:[%s15 + $0x2c] sm:$0xf]
      %v1917 = vld [vmem:[%s15 + $0x30] sm:$0xf]
      %v1918 = vld [vmem:[%s15 + $0x34] sm:$0xf]
      %v1919 = vld [vmem:[%s15 + $0x38] sm:$0xf]
      %v1920 = vld [vmem:[%s15 + $0x3c] sm:$0xf]
      %v1921 = vld [vmem:[%s16] sm:$0x1]
      %v1938 = vunpack.c.l.b16 %v1905
      %v1939 = vunpack.c.l.b16 %v1906
      %v1940 = vunpack.c.l.b16 %v1907
      %v1941 = vunpack.c.l.b16 %v1908
      %v1942 = vunpack.c.l.b16 %v1909
      %v1943 = vunpack.c.l.b16 %v1910
      %v1944 = vunpack.c.l.b16 %v1911
      %v1945 = vunpack.c.l.b16 %v1912
      %v1946 = vunpack.c.l.b16 %v1913
      %v1947 = vunpack.c.l.b16 %v1914
      %v1948 = vunpack.c.l.b16 %v1915
      %v1949 = vunpack.c.l.b16 %v1916
      %v1950 = vunpack.c.l.b16 %v1917
      %v1951 = vunpack.c.l.b16 %v1918
      %v1952 = vunpack.c.l.b16 %v1919
      %v1953 = vunpack.c.l.b16 %v1920
      %v1954 = vpack.c.b16 %v1939, %v1938
      %v1955 = vpack.c.b16 %v1941, %v1940
      %v1956 = vpack.c.b16 %v1943, %v1942
      %v1957 = vpack.c.b16 %v1945, %v1944
      %v1958 = vpack.c.b16 %v1947, %v1946
      %v1959 = vpack.c.b16 %v1949, %v1948
      %v1960 = vpack.c.b16 %v1951, %v1950
      %v1961 = vpack.c.b16 %v1953, %v1952
      %1970 = vmatprep.subr.bf16.mxu0 0
      %1971 = vmatpush1.bf16.msra.mxu0 %v1954
      %1972 = vmatprep.subr.bf16.mxu0 0
      %1973 = vmatpush1.bf16.msra.mxu0 %v1955
      %1974 = vmatprep.subr.bf16.mxu0 0
      %1975 = vmatpush1.bf16.msra.mxu0 %v1956
      %1976 = vmatprep.subr.bf16.mxu0 0
      %1977 = vmatpush1.bf16.msra.mxu0 %v1957
      %1978 = vmatprep.subr.bf16.mxu0 0
      %1979 = vmatpush1.bf16.msra.mxu0 %v1958
      %1980 = vmatprep.subr.bf16.mxu0 0
      %1981 = vmatpush1.bf16.msra.mxu0 %v1959
      %1982 = vmatprep.subr.bf16.mxu0 0
      %1983 = vmatpush1.bf16.msra.mxu0 %v1960
      %1984 = vmatprep.subr.bf16.mxu0 0
      %1985 = vmatpush1.bf16.msra.mxu0 %v1961
      %1986 = vmatprep.subr.bf16.mxu0 0
      %1987 = vmatpush1.bf16.msra.mxu0 0
      %1988 = vmatprep.subr.bf16.mxu0 0
      %1989 = vmatpush1.bf16.msra.mxu0 0
      %1990 = vmatprep.subr.bf16.mxu0 0
      %1991 = vmatpush1.bf16.msra.mxu0 0
      %1992 = vmatprep.subr.bf16.mxu0 0
      %1993 = vmatpush1.bf16.msra.mxu0 0
      %1994 = vmatprep.subr.bf16.mxu0 0
      %1995 = vmatpush1.bf16.msra.mxu0 0
      %1996 = vmatprep.subr.bf16.mxu0 0
      %1997 = vmatpush1.bf16.msra.mxu0 0
      %1998 = vmatprep.subr.bf16.mxu0 0
      %1999 = vmatpush1.bf16.msra.mxu0 0
      %2000 = vmatprep.subr.bf16.mxu0 0
      %2001 = vmatpush1.bf16.msra.mxu0 0
      %2002 = vmatprep.mubr.bf16.mxu0 0
      %2003 = vmatmul.mubr.bf16.gmra.mrb[0].mxu0 %v1904
      %v2004 = vpop.f32.mrb[0].mxu0
      %v2005 = vadd.f32 %v1921, %v2004
      %v2006 = vpop.f32.mrb[0].mxu0
      %v2007 = vpop.f32.mrb[0].mxu0
      %v2008 = vpop.f32.mrb[0].mxu0
      %2009 = vdwg.mxu0
      %2010 = vst [vmem:[%s544] sm:$0x1] %v2005
      %p2011 = scmp.lt.s32.totalorder %s28, 1
      %s2012 = scalar_select %p2011, %s28, 1
      %s2013 = scalar_lea.vmem %s17, %s2012
      // Predicated region
      $region89: #{dr_model_forward.1} parent=87 // pred_check
        %p2014 = pneg %p408
      $region90: #{dr_model_forward.1} parent=87 // pred_check_branch
        %2016 = sbr.rel (%p2014) target = $region92
      $region91: #{dr_model_forward.1} parent=87 // pred_region
        _
      $region92: #{dr_model_forward.1} parent=87 // pred_fallthru
        _
    $region88: #{dr_model_forward.1} parent=5 // pred_fallthru
      _
    %p2017 = scmp.le.s32.totalorder 2, %s23
    // Predicated region
    $region93: #{dr_model_forward.1} parent=5 // pred_check
      %p2018 = pneg %p2017
    $region94: #{dr_model_forward.1} parent=5 // pred_check_branch
      %2020 = sbr.rel (%p2018) target = $region96
    $region95: #{dr_model_forward.1} parent=5 // pred_region
      %s2021 = ssub.s32 %s23, 2
      // Predicated region
      $region97: #{dr_model_forward.1} parent=95 // pred_check
        %p2022 = pneg %p414
      $region98: #{dr_model_forward.1} parent=95 // pred_check_branch
        %2024 = sbr.rel (%p2022) target = $region100
      $region99: #{dr_model_forward.1} parent=95 // pred_region
        %p2025 = scmp.lt.s32.totalorder %s29, 1
        %s2026 = scalar_select %p2025, %s29, 1
        %s2027 = scalar_lea.vmem %s17, %s2026
      $region100: #{dr_model_forward.1} parent=95 // pred_fallthru
        _
    $region96: #{dr_model_forward.1} parent=5 // pred_fallthru
      _
  $region6: #{dr_model_forward.1} parent=0 // loop_footer
    %s27 = sadd.s32 1, %s23
  $region7: #{dr_model_forward.1} parent=0 // loop_footer_branch
    %22 = sbr.rel target = $region3
  $region8: #{dr_model_forward.1} parent=0 // loop_exit
    _

</llo_original>
